<compile_context>
chip_gen: v6e
topology: v6e:2x2x1
jax: 0.10.0
libtpu: 0.0.40
codegen_flags: <defaults>
</compile_context>

<pallas_src>
import math
import functools

import jax
import jax.numpy as jnp
from jax.experimental import pallas as pl
from jax.experimental.pallas import tpu as pltpu

LANE = 128   # lane width: feature dims padded to this (lane-dense compute/stores)
SUB = 8      # sublane width: time chunks sized to a multiple of this


def _round_up(x, m):
    return ((x + m - 1) // m) * m


def _gru_chunk_kernel(idx_ref,      # SMEM (T_pad,) int32 : char indices (scalar prefetch)
                      gates_ref,    # VMEM (V, 1, 3*Hp)   : emb@Wih_cat + fused biases
                      whh_ref,      # VMEM (Hp, 3*Hp)     : hidden->gates weights (r|z|n)
                      bhn_ref,      # VMEM (1, Hp)        : b_hn (scaled by r)
                      wdec_ref,     # VMEM (Hp, Op)       : decoder weight
                      bdec_ref,     # VMEM (1, Op)        : decoder bias
                      h0_ref,       # VMEM (1, Hp)        : initial hidden state
                      logits_ref,   # out VMEM (TC, Op)   : logits for this time chunk
                      hout_ref,     # out VMEM (1, Hp)    : hidden carry (resident across grid)
                      hbuf_ref,     # scratch VMEM (TC, Hp): staged hidden states of the chunk
                      *, seq_len, chunk):
    Hp = whh_ref.shape[0]
    c = pl.program_id(0)

    @pl.when(c == 0)
    def _():
        hout_ref[...] = h0_ref[...]

    h = hout_ref[...]                                     # (1, Hp) carried hidden

    # Bounded static unroll over the time chunk: every slice/store index is a
    # compile-time constant; only the SMEM char-index read is dynamic.
    for t in range(chunk):
        t_global = c * chunk + t
        # Folded Embedding+Wih+bias: a single VMEM row gather replaces a matmul.
        gx = gates_ref[idx_ref[t_global]]                 # (1, 3*Hp)
        gh = jnp.dot(h, whh_ref[...], preferred_element_type=jnp.float32)

        # torch.nn.GRU gate order: r, z, n (vreg-aligned lane slices).
        r = jax.nn.sigmoid(gx[:, 0 * Hp:1 * Hp] + gh[:, 0 * Hp:1 * Hp])
        z = jax.nn.sigmoid(gx[:, 1 * Hp:2 * Hp] + gh[:, 1 * Hp:2 * Hp])
        n = jnp.tanh(gx[:, 2 * Hp:3 * Hp] + r * (gh[:, 2 * Hp:3 * Hp] + bhn_ref[...]))
        h_new = n + z * (h - n)                           # == (1-z)*n + z*h

        if seq_len % chunk != 0:                          # trace-time branch
            h_new = jnp.where(t_global < seq_len, h_new, h)   # mask tail-pad steps
        h = h_new
        hbuf_ref[pl.ds(t, 1), :] = h                      # off the serial critical path

    hout_ref[...] = h

    # Batched decoder for the whole chunk: one M=TC matmul + one dense store
    # instead of TC single-row matmuls/stores interleaved with the recurrence.
    logits_ref[...] = (jnp.dot(hbuf_ref[...], wdec_ref[...],
                               preferred_element_type=jnp.float32) + bdec_ref[...])


def prepare_kernel_params(params):
    """Fuse / fold / pad torch-layout params into the lane-dense kernel layout."""
    V, H = params["embedding"].shape
    O = params["wdec"].shape[1]
    Hp = _round_up(H, LANE)
    Op = _round_up(O, LANE)

    wih = jnp.zeros((Hp, 3 * Hp), jnp.float32)
    whh = jnp.zeros((Hp, 3 * Hp), jnp.float32)
    for g in range(3):
        wih = wih.at[:H, g * Hp:g * Hp + H].set(params["wih"][g])
        whh = whh.at[:H, g * Hp:g * Hp + H].set(params["whh"][g])

    # Fused biases: [b_ir+b_hr | b_iz+b_hz | b_in]; b_hn kept separate (scaled by r).
    bias = jnp.zeros((1, 3 * Hp), jnp.float32)
    bias = bias.at[0, 0 * Hp:0 * Hp + H].set((params["bih"][0] + params["bhh"][0])[0])
    bias = bias.at[0, 1 * Hp:1 * Hp + H].set((params["bih"][1] + params["bhh"][1])[0])
    bias = bias.at[0, 2 * Hp:2 * Hp + H].set(params["bih"][2][0])
    bhn = jnp.zeros((1, Hp), jnp.float32).at[0, :H].set(params["bhh"][2][0])

    # Host-side fold of Embedding -> input-gate pre-activations (per vocab entry).
    emb = jnp.zeros((V, Hp), jnp.float32).at[:, :H].set(params["embedding"])
    gate_table = (jnp.dot(emb, wih) + bias).reshape(V, 1, 3 * Hp)

    wdec = jnp.zeros((Hp, Op), jnp.float32).at[:H, :O].set(params["wdec"])
    bdec = jnp.zeros((1, Op), jnp.float32).at[0, :O].set(params["bdec"][0])

    return dict(gates=gate_table, whh=whh, bhn=bhn, wdec=wdec, bdec=bdec)


@functools.partial(jax.jit, static_argnames=("out_size",))
def rnn_forward_seq(kparams, idx_seq, hidden, *, out_size):
    """Run the module's forward() over a whole character sequence in one kernel.

    Returns (logits[T, out_size], new_hidden[n_layers, 1, H]).
    """
    T = idx_seq.shape[0]
    H = hidden.shape[-1]
    V = kparams["gates"].shape[0]
    Hp = kparams["whh"].shape[0]
    Op = kparams["wdec"].shape[1]

    TC = min(_round_up(T, SUB), 16)          # bounded unroll / time-chunk size
    T_pad = _round_up(T, TC)
    n_chunks = T_pad // TC

    idx = jnp.clip(idx_seq.astype(jnp.int32), 0, V - 1)   # guard OOB vocab indices
    idx = jnp.pad(idx, (0, T_pad - T))                     # pad steps masked in-kernel

    h0 = jnp.zeros((1, Hp), jnp.float32).at[:, :H].set(
        hidden.reshape(1, H).astype(jnp.float32))

    kernel = functools.partial(_gru_chunk_kernel, seq_len=T, chunk=TC)

    grid_spec = pltpu.PrefetchScalarGridSpec(
        num_scalar_prefetch=1,               # char indices -> SMEM
        grid=(n_chunks,),
        in_specs=[
            pl.BlockSpec((V, 1, 3 * Hp), lambda c, i: (0, 0, 0)),  # gate table (resident)
            pl.BlockSpec((Hp, 3 * Hp), lambda c, i: (0, 0)),       # whh        (resident)
            pl.BlockSpec((1, Hp), lambda c, i: (0, 0)),            # b_hn
            pl.BlockSpec((Hp, Op), lambda c, i: (0, 0)),           # decoder weight
            pl.BlockSpec((1, Op), lambda c, i: (0, 0)),            # decoder bias
            pl.BlockSpec((1, Hp), lambda c, i: (0, 0)),            # initial hidden
        ],
        out_specs=(
            pl.BlockSpec((TC, Op), lambda c, i: (c, 0)),           # logits chunk (pipelined)
            pl.BlockSpec((1, Hp), lambda c, i: (0, 0)),            # hidden carry (resident)
        ),
        scratch_shapes=[pltpu.VMEM((TC, Hp), jnp.float32)],        # staged h of the chunk
    )

    logits_pad, h_pad = pl.pallas_call(
        kernel,
        grid_spec=grid_spec,
        out_shape=(jax.ShapeDtypeStruct((T_pad, Op), jnp.float32),
                   jax.ShapeDtypeStruct((1, Hp), jnp.float32)),
        compiler_params=pltpu.CompilerParams(
            dimension_semantics=("arbitrary",)),       # sequential recurrence over chunks
    )(idx, kparams["gates"], kparams["whh"], kparams["bhn"],
      kparams["wdec"], kparams["bdec"], h0)

    logits = logits_pad[:T, :out_size]
    h_new = h_pad[:, :H].reshape(hidden.shape)
    return logits, h_new


def rnn_forward(kparams, input_idx, hidden, output_size):
    """Exact equivalent of RNN.forward(input, hidden): one character step."""
    idx = jnp.reshape(jnp.asarray(input_idx, jnp.int32), (1,))
    logits, h_new = rnn_forward_seq(kparams, idx, hidden, out_size=output_size)
    return logits, h_new   # logits: (1, output_size), h_new: (n_layers, 1, H)


def rnn_forward_ref(params, input_idx, hidden):
    """Pure-JAX reference (torch.nn.GRU semantics) for one step."""
    x = params["embedding"][input_idx].reshape(1, -1)
    h = hidden[0]
    r = jax.nn.sigmoid(x @ params["wih"][0] + params["bih"][0]
                       + h @ params["whh"][0] + params["bhh"][0])
    z = jax.nn.sigmoid(x @ params["wih"][1] + params["bih"][1]
                       + h @ params["whh"][1] + params["bhh"][1])
    n = jnp.tanh(x @ params["wih"][2] + params["bih"][2]
                 + r * (h @ params["whh"][2] + params["bhh"][2]))
    h_new = (1.0 - z) * n + z * h
    out = h_new @ params["wdec"] + params["bdec"]
    return out, h_new[None]


def init_params(key, input_size, hidden_size, output_size):
    keys = jax.random.split(key, 7)
    bound = 1.0 / math.sqrt(hidden_size)
    return dict(
        embedding=jax.random.normal(keys[0], (input_size, hidden_size), jnp.float32),
        wih=jax.random.uniform(keys[1], (3, hidden_size, hidden_size),
                               jnp.float32, -bound, bound),
        whh=jax.random.uniform(keys[2], (3, hidden_size, hidden_size),
                               jnp.float32, -bound, bound),
        bih=jax.random.uniform(keys[3], (3, 1, hidden_size),
                               jnp.float32, -bound, bound),
        bhh=jax.random.uniform(keys[4], (3, 1, hidden_size),
                               jnp.float32, -bound, bound),
        wdec=jax.random.uniform(keys[5], (hidden_size, output_size),
                                jnp.float32, -bound, bound),
        bdec=jax.random.uniform(keys[6], (1, output_size),
                                jnp.float32, -bound, bound),
    )


if __name__ == "__main__":
    input_size = 16     # vocab size
    hidden_size = 32
    output_size = 16
    n_layers = 1
    seq_len = 8

    params = init_params(jax.random.PRNGKey(0), input_size, hidden_size, output_size)
    kparams = prepare_kernel_params(params)

    idx_seq = jax.random.randint(jax.random.PRNGKey(1), (seq_len,), 0, input_size,
                                 dtype=jnp.int32)
    hidden0 = jnp.zeros((n_layers, 1, hidden_size), jnp.float32)   # init_hidden()

    # Fused sequence kernel: seq_len applications of forward() in one pallas_call.
    logits, h_final = rnn_forward_seq(kparams, idx_seq, hidden0, out_size=output_size)
    jax.block_until_ready((logits, h_final))

    # Reference: run the original per-character forward() seq_len times.
    h_ref = hidden0
    ref_outs = []
    for t in range(seq_len):
        o_t, h_ref = rnn_forward_ref(params, idx_seq[t], h_ref)
        ref_outs.append(o_t)
    ref_logits = jnp.concatenate(ref_outs, axis=0)

    assert logits.shape == (seq_len, output_size)
    assert h_final.shape == (n_layers, 1, hidden_size)
    assert jnp.allclose(logits, ref_logits, atol=1e-5, rtol=1e-5)
    assert jnp.allclose(h_final, h_ref, atol=1e-5, rtol=1e-5)

    # Single-step path (exact module.forward signature/semantics).
    out1, h1 = rnn_forward(kparams, jnp.array(5, jnp.int32), hidden0, output_size)
    jax.block_until_ready((out1, h1))
    out1_ref, h1_ref = rnn_forward_ref(params, jnp.array(5, jnp.int32), hidden0)
    assert out1.shape == (1, output_size) and h1.shape == (n_layers, 1, hidden_size)
    assert jnp.allclose(out1, out1_ref, atol=1e-5, rtol=1e-5)
    assert jnp.allclose(h1, h1_ref, atol=1e-5, rtol=1e-5)

    print("KERNEL_OK")
</pallas_src>

<mosaic_0001>
module attributes {stable_mosaic.version = 11 : i64} {
  func.func @_gru_chunk_kernel(%arg0: i32, %arg1: memref<8xi32, #tpu.memory_space<smem>>, %arg2: memref<16x1x384xf32, #tpu.memory_space<vmem>>, %arg3: memref<128x384xf32, #tpu.memory_space<vmem>>, %arg4: memref<1x128xf32, #tpu.memory_space<vmem>>, %arg5: memref<128x128xf32, #tpu.memory_space<vmem>>, %arg6: memref<1x128xf32, #tpu.memory_space<vmem>>, %arg7: memref<1x128xf32, #tpu.memory_space<vmem>>, %arg8: memref<8x128xf32, #tpu.memory_space<vmem>>, %arg9: memref<1x128xf32, #tpu.memory_space<vmem>>, %arg10: memref<8x128xf32, #tpu.memory_space<vmem>>) attributes {dimension_semantics = [#tpu.dimension_semantics<arbitrary>], iteration_bounds = array<i64: 1>, scalar_prefetch = 1 : i64, scratch_operands = 1 : i64, tpu.core_type = #tpu.core_type<tc>, window_params = [{pipeline_mode = #tpu.pipeline_mode<synchronous>, transform_indices = @transform_0, window_bounds = array<i64: 16, 1, 384>}, {pipeline_mode = #tpu.pipeline_mode<synchronous>, transform_indices = @transform_1, window_bounds = array<i64: 128, 384>}, {pipeline_mode = #tpu.pipeline_mode<synchronous>, transform_indices = @transform_2, window_bounds = array<i64: 1, 128>}, {pipeline_mode = #tpu.pipeline_mode<synchronous>, transform_indices = @transform_3, window_bounds = array<i64: 128, 128>}, {pipeline_mode = #tpu.pipeline_mode<synchronous>, transform_indices = @transform_4, window_bounds = array<i64: 1, 128>}, {pipeline_mode = #tpu.pipeline_mode<synchronous>, transform_indices = @transform_5, window_bounds = array<i64: 1, 128>}, {transform_indices = @transform_6, window_bounds = array<i64: 8, 128>}, {pipeline_mode = #tpu.pipeline_mode<synchronous>, transform_indices = @transform_7, window_bounds = array<i64: 1, 128>}]} {
    %c0_i32 = arith.constant 0 : i32
    %0 = arith.cmpi eq, %arg0, %c0_i32 : i32
    %1 = arith.extui %0 : i1 to i32
    %c0_i32_0 = arith.constant 0 : i32
    %2 = arith.cmpi ne, %1, %c0_i32_0 : i32
    scf.if %2 {
      %c0_101 = arith.constant 0 : index
      %c0_102 = arith.constant 0 : index
      %300 = vector.load %arg7[%c0_101, %c0_102] : memref<1x128xf32, #tpu.memory_space<vmem>>, vector<1x128xf32>
      %c0_103 = arith.constant 0 : index
      %c0_104 = arith.constant 0 : index
      %301 = vector.load %arg9[%c0_103, %c0_104] : memref<1x128xf32, #tpu.memory_space<vmem>>, vector<1x128xf32>
      tpu.vector_store %arg9[%c0_103, %c0_104], %300 {strides = array<i32>} : memref<1x128xf32, #tpu.memory_space<vmem>>, vector<1x128xf32>,
    } else {
    }
    %c0 = arith.constant 0 : index
    %c0_1 = arith.constant 0 : index
    %3 = vector.load %arg9[%c0, %c0_1] : memref<1x128xf32, #tpu.memory_space<vmem>>, vector<1x128xf32>
    %c8_i32 = arith.constant 8 : i32
    %4 = arith.muli %arg0, %c8_i32 : i32
    %c0_i32_2 = arith.constant 0 : i32
    %5 = arith.addi %4, %c0_i32_2 : i32
    %6 = arith.index_cast %5 : i32 to index
    %7 = memref.load %arg1[%6] : memref<8xi32, #tpu.memory_space<smem>>
    %8 = arith.index_cast %7 : i32 to index
    %c0_3 = arith.constant 0 : index
    %c0_4 = arith.constant 0 : index
    %9 = vector.load %arg2[%8, %c0_3, %c0_4] : memref<16x1x384xf32, #tpu.memory_space<vmem>>, vector<1x1x384xf32>
    %10 = vector.shape_cast %9 : vector<1x1x384xf32> to vector<1x384xf32>
    %c0_5 = arith.constant 0 : index
    %c0_6 = arith.constant 0 : index
    %11 = vector.load %arg3[%c0_5, %c0_6] : memref<128x384xf32, #tpu.memory_space<vmem>>, vector<128x384xf32>
    %cst = arith.constant dense<0.000000e+00> : vector<1x384xf32>
    %12 = tpu.matmul %3, %11, %cst {dimension_numbers = #tpu.dot_dimension_numbers<[1], [0], [0], [1], [0, 0, 1, 1], [], []>} : vector<1x128xf32>, vector<128x384xf32>, vector<1x384xf32> -> vector<1x384xf32>
    %13 = vector.extract_strided_slice %10 {offsets = [0, 0], sizes = [1, 128], strides = [1, 1]} : vector<1x384xf32> to vector<1x128xf32>
    %14 = vector.extract_strided_slice %12 {offsets = [0, 0], sizes = [1, 128], strides = [1, 1]} : vector<1x384xf32> to vector<1x128xf32>
    %15 = arith.addf %13, %14 : vector<1x128xf32>
    %16 = arith.negf %15 : vector<1x128xf32>
    %17 = math.exp %16 : vector<1x128xf32>
    %cst_7 = arith.constant 1.000000e+00 : f32
    %18 = vector.broadcast %cst_7 : f32 to vector<1x128xf32>
    %19 = arith.addf %18, %17 : vector<1x128xf32>
    %20 = arith.divf %18, %19 : vector<1x128xf32>
    %21 = vector.extract_strided_slice %10 {offsets = [0, 128], sizes = [1, 128], strides = [1, 1]} : vector<1x384xf32> to vector<1x128xf32>
    %22 = vector.extract_strided_slice %12 {offsets = [0, 128], sizes = [1, 128], strides = [1, 1]} : vector<1x384xf32> to vector<1x128xf32>
    %23 = arith.addf %21, %22 : vector<1x128xf32>
    %24 = arith.negf %23 : vector<1x128xf32>
    %25 = math.exp %24 : vector<1x128xf32>
    %cst_8 = arith.constant 1.000000e+00 : f32
    %26 = vector.broadcast %cst_8 : f32 to vector<1x128xf32>
    %27 = arith.addf %26, %25 : vector<1x128xf32>
    %28 = arith.divf %26, %27 : vector<1x128xf32>
    %29 = vector.extract_strided_slice %10 {offsets = [0, 256], sizes = [1, 128], strides = [1, 1]} : vector<1x384xf32> to vector<1x128xf32>
    %30 = vector.extract_strided_slice %12 {offsets = [0, 256], sizes = [1, 128], strides = [1, 1]} : vector<1x384xf32> to vector<1x128xf32>
    %c0_9 = arith.constant 0 : index
    %c0_10 = arith.constant 0 : index
    %31 = vector.load %arg4[%c0_9, %c0_10] : memref<1x128xf32, #tpu.memory_space<vmem>>, vector<1x128xf32>
    %32 = arith.addf %30, %31 : vector<1x128xf32>
    %33 = arith.mulf %20, %32 : vector<1x128xf32>
    %34 = arith.addf %29, %33 : vector<1x128xf32>
    %35 = math.tanh %34 : vector<1x128xf32>
    %36 = arith.subf %3, %35 : vector<1x128xf32>
    %37 = arith.mulf %28, %36 : vector<1x128xf32>
    %38 = arith.addf %35, %37 : vector<1x128xf32>
    %c0_11 = arith.constant 0 : index
    %c0_12 = arith.constant 0 : index
    %39 = vector.load %arg10[%c0_11, %c0_12] : memref<8x128xf32, #tpu.memory_space<vmem>>, vector<1x128xf32>
    tpu.vector_store %arg10[%c0_11, %c0_12], %38 {strides = array<i32>} : memref<8x128xf32, #tpu.memory_space<vmem>>, vector<1x128xf32>,
    %c8_i32_13 = arith.constant 8 : i32
    %40 = arith.muli %arg0, %c8_i32_13 : i32
    %c1_i32 = arith.constant 1 : i32
    %41 = arith.addi %40, %c1_i32 : i32
    %42 = arith.index_cast %41 : i32 to index
    %43 = memref.load %arg1[%42] : memref<8xi32, #tpu.memory_space<smem>>
    %44 = arith.index_cast %43 : i32 to index
    %c0_14 = arith.constant 0 : index
    %c0_15 = arith.constant 0 : index
    %45 = vector.load %arg2[%44, %c0_14, %c0_15] : memref<16x1x384xf32, #tpu.memory_space<vmem>>, vector<1x1x384xf32>
    %46 = vector.shape_cast %45 : vector<1x1x384xf32> to vector<1x384xf32>
    %c0_16 = arith.constant 0 : index
    %c0_17 = arith.constant 0 : index
    %47 = vector.load %arg3[%c0_16, %c0_17] : memref<128x384xf32, #tpu.memory_space<vmem>>, vector<128x384xf32>
    %cst_18 = arith.constant dense<0.000000e+00> : vector<1x384xf32>
    %48 = tpu.matmul %38, %47, %cst_18 {dimension_numbers = #tpu.dot_dimension_numbers<[1], [0], [0], [1], [0, 0, 1, 1], [], []>} : vector<1x128xf32>, vector<128x384xf32>, vector<1x384xf32> -> vector<1x384xf32>
    %49 = vector.extract_strided_slice %46 {offsets = [0, 0], sizes = [1, 128], strides = [1, 1]} : vector<1x384xf32> to vector<1x128xf32>
    %50 = vector.extract_strided_slice %48 {offsets = [0, 0], sizes = [1, 128], strides = [1, 1]} : vector<1x384xf32> to vector<1x128xf32>
    %51 = arith.addf %49, %50 : vector<1x128xf32>
    %52 = arith.negf %51 : vector<1x128xf32>
    %53 = math.exp %52 : vector<1x128xf32>
    %cst_19 = arith.constant 1.000000e+00 : f32
    %54 = vector.broadcast %cst_19 : f32 to vector<1x128xf32>
    %55 = arith.addf %54, %53 : vector<1x128xf32>
    %56 = arith.divf %54, %55 : vector<1x128xf32>
    %57 = vector.extract_strided_slice %46 {offsets = [0, 128], sizes = [1, 128], strides = [1, 1]} : vector<1x384xf32> to vector<1x128xf32>
    %58 = vector.extract_strided_slice %48 {offsets = [0, 128], sizes = [1, 128], strides = [1, 1]} : vector<1x384xf32> to vector<1x128xf32>
    %59 = arith.addf %57, %58 : vector<1x128xf32>
    %60 = arith.negf %59 : vector<1x128xf32>
    %61 = math.exp %60 : vector<1x128xf32>
    %cst_20 = arith.constant 1.000000e+00 : f32
    %62 = vector.broadcast %cst_20 : f32 to vector<1x128xf32>
    %63 = arith.addf %62, %61 : vector<1x128xf32>
    %64 = arith.divf %62, %63 : vector<1x128xf32>
    %65 = vector.extract_strided_slice %46 {offsets = [0, 256], sizes = [1, 128], strides = [1, 1]} : vector<1x384xf32> to vector<1x128xf32>
    %66 = vector.extract_strided_slice %48 {offsets = [0, 256], sizes = [1, 128], strides = [1, 1]} : vector<1x384xf32> to vector<1x128xf32>
    %c0_21 = arith.constant 0 : index
    %c0_22 = arith.constant 0 : index
    %67 = vector.load %arg4[%c0_21, %c0_22] : memref<1x128xf32, #tpu.memory_space<vmem>>, vector<1x128xf32>
    %68 = arith.addf %66, %67 : vector<1x128xf32>
    %69 = arith.mulf %56, %68 : vector<1x128xf32>
    %70 = arith.addf %65, %69 : vector<1x128xf32>
    %71 = math.tanh %70 : vector<1x128xf32>
    %72 = arith.subf %38, %71 : vector<1x128xf32>
    %73 = arith.mulf %64, %72 : vector<1x128xf32>
    %74 = arith.addf %71, %73 : vector<1x128xf32>
    %c1 = arith.constant 1 : index
    %c0_23 = arith.constant 0 : index
    %75 = vector.load %arg10[%c1, %c0_23] : memref<8x128xf32, #tpu.memory_space<vmem>>, vector<1x128xf32>
    tpu.vector_store %arg10[%c1, %c0_23], %74 {strides = array<i32>} : memref<8x128xf32, #tpu.memory_space<vmem>>, vector<1x128xf32>,
    %c8_i32_24 = arith.constant 8 : i32
    %76 = arith.muli %arg0, %c8_i32_24 : i32
    %c2_i32 = arith.constant 2 : i32
    %77 = arith.addi %76, %c2_i32 : i32
    %78 = arith.index_cast %77 : i32 to index
    %79 = memref.load %arg1[%78] : memref<8xi32, #tpu.memory_space<smem>>
    %80 = arith.index_cast %79 : i32 to index
    %c0_25 = arith.constant 0 : index
    %c0_26 = arith.constant 0 : index
    %81 = vector.load %arg2[%80, %c0_25, %c0_26] : memref<16x1x384xf32, #tpu.memory_space<vmem>>, vector<1x1x384xf32>
    %82 = vector.shape_cast %81 : vector<1x1x384xf32> to vector<1x384xf32>
    %c0_27 = arith.constant 0 : index
    %c0_28 = arith.constant 0 : index
    %83 = vector.load %arg3[%c0_27, %c0_28] : memref<128x384xf32, #tpu.memory_space<vmem>>, vector<128x384xf32>
    %cst_29 = arith.constant dense<0.000000e+00> : vector<1x384xf32>
    %84 = tpu.matmul %74, %83, %cst_29 {dimension_numbers = #tpu.dot_dimension_numbers<[1], [0], [0], [1], [0, 0, 1, 1], [], []>} : vector<1x128xf32>, vector<128x384xf32>, vector<1x384xf32> -> vector<1x384xf32>
    %85 = vector.extract_strided_slice %82 {offsets = [0, 0], sizes = [1, 128], strides = [1, 1]} : vector<1x384xf32> to vector<1x128xf32>
    %86 = vector.extract_strided_slice %84 {offsets = [0, 0], sizes = [1, 128], strides = [1, 1]} : vector<1x384xf32> to vector<1x128xf32>
    %87 = arith.addf %85, %86 : vector<1x128xf32>
    %88 = arith.negf %87 : vector<1x128xf32>
    %89 = math.exp %88 : vector<1x128xf32>
    %cst_30 = arith.constant 1.000000e+00 : f32
    %90 = vector.broadcast %cst_30 : f32 to vector<1x128xf32>
    %91 = arith.addf %90, %89 : vector<1x128xf32>
    %92 = arith.divf %90, %91 : vector<1x128xf32>
    %93 = vector.extract_strided_slice %82 {offsets = [0, 128], sizes = [1, 128], strides = [1, 1]} : vector<1x384xf32> to vector<1x128xf32>
    %94 = vector.extract_strided_slice %84 {offsets = [0, 128], sizes = [1, 128], strides = [1, 1]} : vector<1x384xf32> to vector<1x128xf32>
    %95 = arith.addf %93, %94 : vector<1x128xf32>
    %96 = arith.negf %95 : vector<1x128xf32>
    %97 = math.exp %96 : vector<1x128xf32>
    %cst_31 = arith.constant 1.000000e+00 : f32
    %98 = vector.broadcast %cst_31 : f32 to vector<1x128xf32>
    %99 = arith.addf %98, %97 : vector<1x128xf32>
    %100 = arith.divf %98, %99 : vector<1x128xf32>
    %101 = vector.extract_strided_slice %82 {offsets = [0, 256], sizes = [1, 128], strides = [1, 1]} : vector<1x384xf32> to vector<1x128xf32>
    %102 = vector.extract_strided_slice %84 {offsets = [0, 256], sizes = [1, 128], strides = [1, 1]} : vector<1x384xf32> to vector<1x128xf32>
    %c0_32 = arith.constant 0 : index
    %c0_33 = arith.constant 0 : index
    %103 = vector.load %arg4[%c0_32, %c0_33] : memref<1x128xf32, #tpu.memory_space<vmem>>, vector<1x128xf32>
    %104 = arith.addf %102, %103 : vector<1x128xf32>
    %105 = arith.mulf %92, %104 : vector<1x128xf32>
    %106 = arith.addf %101, %105 : vector<1x128xf32>
    %107 = math.tanh %106 : vector<1x128xf32>
    %108 = arith.subf %74, %107 : vector<1x128xf32>
    %109 = arith.mulf %100, %108 : vector<1x128xf32>
    %110 = arith.addf %107, %109 : vector<1x128xf32>
    %c2 = arith.constant 2 : index
    %c0_34 = arith.constant 0 : index
    %111 = vector.load %arg10[%c2, %c0_34] : memref<8x128xf32, #tpu.memory_space<vmem>>, vector<1x128xf32>
    tpu.vector_store %arg10[%c2, %c0_34], %110 {strides = array<i32>} : memref<8x128xf32, #tpu.memory_space<vmem>>, vector<1x128xf32>,
    %c8_i32_35 = arith.constant 8 : i32
    %112 = arith.muli %arg0, %c8_i32_35 : i32
    %c3_i32 = arith.constant 3 : i32
    %113 = arith.addi %112, %c3_i32 : i32
    %114 = arith.index_cast %113 : i32 to index
    %115 = memref.load %arg1[%114] : memref<8xi32, #tpu.memory_space<smem>>
    %116 = arith.index_cast %115 : i32 to index
    %c0_36 = arith.constant 0 : index
    %c0_37 = arith.constant 0 : index
    %117 = vector.load %arg2[%116, %c0_36, %c0_37] : memref<16x1x384xf32, #tpu.memory_space<vmem>>, vector<1x1x384xf32>
    %118 = vector.shape_cast %117 : vector<1x1x384xf32> to vector<1x384xf32>
    %c0_38 = arith.constant 0 : index
    %c0_39 = arith.constant 0 : index
    %119 = vector.load %arg3[%c0_38, %c0_39] : memref<128x384xf32, #tpu.memory_space<vmem>>, vector<128x384xf32>
    %cst_40 = arith.constant dense<0.000000e+00> : vector<1x384xf32>
    %120 = tpu.matmul %110, %119, %cst_40 {dimension_numbers = #tpu.dot_dimension_numbers<[1], [0], [0], [1], [0, 0, 1, 1], [], []>} : vector<1x128xf32>, vector<128x384xf32>, vector<1x384xf32> -> vector<1x384xf32>
    %121 = vector.extract_strided_slice %118 {offsets = [0, 0], sizes = [1, 128], strides = [1, 1]} : vector<1x384xf32> to vector<1x128xf32>
    %122 = vector.extract_strided_slice %120 {offsets = [0, 0], sizes = [1, 128], strides = [1, 1]} : vector<1x384xf32> to vector<1x128xf32>
    %123 = arith.addf %121, %122 : vector<1x128xf32>
    %124 = arith.negf %123 : vector<1x128xf32>
    %125 = math.exp %124 : vector<1x128xf32>
    %cst_41 = arith.constant 1.000000e+00 : f32
    %126 = vector.broadcast %cst_41 : f32 to vector<1x128xf32>
    %127 = arith.addf %126, %125 : vector<1x128xf32>
    %128 = arith.divf %126, %127 : vector<1x128xf32>
    %129 = vector.extract_strided_slice %118 {offsets = [0, 128], sizes = [1, 128], strides = [1, 1]} : vector<1x384xf32> to vector<1x128xf32>
    %130 = vector.extract_strided_slice %120 {offsets = [0, 128], sizes = [1, 128], strides = [1, 1]} : vector<1x384xf32> to vector<1x128xf32>
    %131 = arith.addf %129, %130 : vector<1x128xf32>
    %132 = arith.negf %131 : vector<1x128xf32>
    %133 = math.exp %132 : vector<1x128xf32>
    %cst_42 = arith.constant 1.000000e+00 : f32
    %134 = vector.broadcast %cst_42 : f32 to vector<1x128xf32>
    %135 = arith.addf %134, %133 : vector<1x128xf32>
    %136 = arith.divf %134, %135 : vector<1x128xf32>
    %137 = vector.extract_strided_slice %118 {offsets = [0, 256], sizes = [1, 128], strides = [1, 1]} : vector<1x384xf32> to vector<1x128xf32>
    %138 = vector.extract_strided_slice %120 {offsets = [0, 256], sizes = [1, 128], strides = [1, 1]} : vector<1x384xf32> to vector<1x128xf32>
    %c0_43 = arith.constant 0 : index
    %c0_44 = arith.constant 0 : index
    %139 = vector.load %arg4[%c0_43, %c0_44] : memref<1x128xf32, #tpu.memory_space<vmem>>, vector<1x128xf32>
    %140 = arith.addf %138, %139 : vector<1x128xf32>
    %141 = arith.mulf %128, %140 : vector<1x128xf32>
    %142 = arith.addf %137, %141 : vector<1x128xf32>
    %143 = math.tanh %142 : vector<1x128xf32>
    %144 = arith.subf %110, %143 : vector<1x128xf32>
    %145 = arith.mulf %136, %144 : vector<1x128xf32>
    %146 = arith.addf %143, %145 : vector<1x128xf32>
    %c3 = arith.constant 3 : index
    %c0_45 = arith.constant 0 : index
    %147 = vector.load %arg10[%c3, %c0_45] : memref<8x128xf32, #tpu.memory_space<vmem>>, vector<1x128xf32>
    tpu.vector_store %arg10[%c3, %c0_45], %146 {strides = array<i32>} : memref<8x128xf32, #tpu.memory_space<vmem>>, vector<1x128xf32>,
    %c8_i32_46 = arith.constant 8 : i32
    %148 = arith.muli %arg0, %c8_i32_46 : i32
    %c4_i32 = arith.constant 4 : i32
    %149 = arith.addi %148, %c4_i32 : i32
    %150 = arith.index_cast %149 : i32 to index
    %151 = memref.load %arg1[%150] : memref<8xi32, #tpu.memory_space<smem>>
    %152 = arith.index_cast %151 : i32 to index
    %c0_47 = arith.constant 0 : index
    %c0_48 = arith.constant 0 : index
    %153 = vector.load %arg2[%152, %c0_47, %c0_48] : memref<16x1x384xf32, #tpu.memory_space<vmem>>, vector<1x1x384xf32>
    %154 = vector.shape_cast %153 : vector<1x1x384xf32> to vector<1x384xf32>
    %c0_49 = arith.constant 0 : index
    %c0_50 = arith.constant 0 : index
    %155 = vector.load %arg3[%c0_49, %c0_50] : memref<128x384xf32, #tpu.memory_space<vmem>>, vector<128x384xf32>
    %cst_51 = arith.constant dense<0.000000e+00> : vector<1x384xf32>
    %156 = tpu.matmul %146, %155, %cst_51 {dimension_numbers = #tpu.dot_dimension_numbers<[1], [0], [0], [1], [0, 0, 1, 1], [], []>} : vector<1x128xf32>, vector<128x384xf32>, vector<1x384xf32> -> vector<1x384xf32>
    %157 = vector.extract_strided_slice %154 {offsets = [0, 0], sizes = [1, 128], strides = [1, 1]} : vector<1x384xf32> to vector<1x128xf32>
    %158 = vector.extract_strided_slice %156 {offsets = [0, 0], sizes = [1, 128], strides = [1, 1]} : vector<1x384xf32> to vector<1x128xf32>
    %159 = arith.addf %157, %158 : vector<1x128xf32>
    %160 = arith.negf %159 : vector<1x128xf32>
    %161 = math.exp %160 : vector<1x128xf32>
    %cst_52 = arith.constant 1.000000e+00 : f32
    %162 = vector.broadcast %cst_52 : f32 to vector<1x128xf32>
    %163 = arith.addf %162, %161 : vector<1x128xf32>
    %164 = arith.divf %162, %163 : vector<1x128xf32>
    %165 = vector.extract_strided_slice %154 {offsets = [0, 128], sizes = [1, 128], strides = [1, 1]} : vector<1x384xf32> to vector<1x128xf32>
    %166 = vector.extract_strided_slice %156 {offsets = [0, 128], sizes = [1, 128], strides = [1, 1]} : vector<1x384xf32> to vector<1x128xf32>
    %167 = arith.addf %165, %166 : vector<1x128xf32>
    %168 = arith.negf %167 : vector<1x128xf32>
    %169 = math.exp %168 : vector<1x128xf32>
    %cst_53 = arith.constant 1.000000e+00 : f32
    %170 = vector.broadcast %cst_53 : f32 to vector<1x128xf32>
    %171 = arith.addf %170, %169 : vector<1x128xf32>
    %172 = arith.divf %170, %171 : vector<1x128xf32>
    %173 = vector.extract_strided_slice %154 {offsets = [0, 256], sizes = [1, 128], strides = [1, 1]} : vector<1x384xf32> to vector<1x128xf32>
    %174 = vector.extract_strided_slice %156 {offsets = [0, 256], sizes = [1, 128], strides = [1, 1]} : vector<1x384xf32> to vector<1x128xf32>
    %c0_54 = arith.constant 0 : index
    %c0_55 = arith.constant 0 : index
    %175 = vector.load %arg4[%c0_54, %c0_55] : memref<1x128xf32, #tpu.memory_space<vmem>>, vector<1x128xf32>
    %176 = arith.addf %174, %175 : vector<1x128xf32>
    %177 = arith.mulf %164, %176 : vector<1x128xf32>
    %178 = arith.addf %173, %177 : vector<1x128xf32>
    %179 = math.tanh %178 : vector<1x128xf32>
    %180 = arith.subf %146, %179 : vector<1x128xf32>
    %181 = arith.mulf %172, %180 : vector<1x128xf32>
    %182 = arith.addf %179, %181 : vector<1x128xf32>
    %c4 = arith.constant 4 : index
    %c0_56 = arith.constant 0 : index
    %183 = vector.load %arg10[%c4, %c0_56] : memref<8x128xf32, #tpu.memory_space<vmem>>, vector<1x128xf32>
    tpu.vector_store %arg10[%c4, %c0_56], %182 {strides = array<i32>} : memref<8x128xf32, #tpu.memory_space<vmem>>, vector<1x128xf32>,
    %c8_i32_57 = arith.constant 8 : i32
    %184 = arith.muli %arg0, %c8_i32_57 : i32
    %c5_i32 = arith.constant 5 : i32
    %185 = arith.addi %184, %c5_i32 : i32
    %186 = arith.index_cast %185 : i32 to index
    %187 = memref.load %arg1[%186] : memref<8xi32, #tpu.memory_space<smem>>
    %188 = arith.index_cast %187 : i32 to index
    %c0_58 = arith.constant 0 : index
    %c0_59 = arith.constant 0 : index
    %189 = vector.load %arg2[%188, %c0_58, %c0_59] : memref<16x1x384xf32, #tpu.memory_space<vmem>>, vector<1x1x384xf32>
    %190 = vector.shape_cast %189 : vector<1x1x384xf32> to vector<1x384xf32>
    %c0_60 = arith.constant 0 : index
    %c0_61 = arith.constant 0 : index
    %191 = vector.load %arg3[%c0_60, %c0_61] : memref<128x384xf32, #tpu.memory_space<vmem>>, vector<128x384xf32>
    %cst_62 = arith.constant dense<0.000000e+00> : vector<1x384xf32>
    %192 = tpu.matmul %182, %191, %cst_62 {dimension_numbers = #tpu.dot_dimension_numbers<[1], [0], [0], [1], [0, 0, 1, 1], [], []>} : vector<1x128xf32>, vector<128x384xf32>, vector<1x384xf32> -> vector<1x384xf32>
    %193 = vector.extract_strided_slice %190 {offsets = [0, 0], sizes = [1, 128], strides = [1, 1]} : vector<1x384xf32> to vector<1x128xf32>
    %194 = vector.extract_strided_slice %192 {offsets = [0, 0], sizes = [1, 128], strides = [1, 1]} : vector<1x384xf32> to vector<1x128xf32>
    %195 = arith.addf %193, %194 : vector<1x128xf32>
    %196 = arith.negf %195 : vector<1x128xf32>
    %197 = math.exp %196 : vector<1x128xf32>
    %cst_63 = arith.constant 1.000000e+00 : f32
    %198 = vector.broadcast %cst_63 : f32 to vector<1x128xf32>
    %199 = arith.addf %198, %197 : vector<1x128xf32>
    %200 = arith.divf %198, %199 : vector<1x128xf32>
    %201 = vector.extract_strided_slice %190 {offsets = [0, 128], sizes = [1, 128], strides = [1, 1]} : vector<1x384xf32> to vector<1x128xf32>
    %202 = vector.extract_strided_slice %192 {offsets = [0, 128], sizes = [1, 128], strides = [1, 1]} : vector<1x384xf32> to vector<1x128xf32>
    %203 = arith.addf %201, %202 : vector<1x128xf32>
    %204 = arith.negf %203 : vector<1x128xf32>
    %205 = math.exp %204 : vector<1x128xf32>
    %cst_64 = arith.constant 1.000000e+00 : f32
    %206 = vector.broadcast %cst_64 : f32 to vector<1x128xf32>
    %207 = arith.addf %206, %205 : vector<1x128xf32>
    %208 = arith.divf %206, %207 : vector<1x128xf32>
    %209 = vector.extract_strided_slice %190 {offsets = [0, 256], sizes = [1, 128], strides = [1, 1]} : vector<1x384xf32> to vector<1x128xf32>
    %210 = vector.extract_strided_slice %192 {offsets = [0, 256], sizes = [1, 128], strides = [1, 1]} : vector<1x384xf32> to vector<1x128xf32>
    %c0_65 = arith.constant 0 : index
    %c0_66 = arith.constant 0 : index
    %211 = vector.load %arg4[%c0_65, %c0_66] : memref<1x128xf32, #tpu.memory_space<vmem>>, vector<1x128xf32>
    %212 = arith.addf %210, %211 : vector<1x128xf32>
    %213 = arith.mulf %200, %212 : vector<1x128xf32>
    %214 = arith.addf %209, %213 : vector<1x128xf32>
    %215 = math.tanh %214 : vector<1x128xf32>
    %216 = arith.subf %182, %215 : vector<1x128xf32>
    %217 = arith.mulf %208, %216 : vector<1x128xf32>
    %218 = arith.addf %215, %217 : vector<1x128xf32>
    %c5 = arith.constant 5 : index
    %c0_67 = arith.constant 0 : index
    %219 = vector.load %arg10[%c5, %c0_67] : memref<8x128xf32, #tpu.memory_space<vmem>>, vector<1x128xf32>
    tpu.vector_store %arg10[%c5, %c0_67], %218 {strides = array<i32>} : memref<8x128xf32, #tpu.memory_space<vmem>>, vector<1x128xf32>,
    %c8_i32_68 = arith.constant 8 : i32
    %220 = arith.muli %arg0, %c8_i32_68 : i32
    %c6_i32 = arith.constant 6 : i32
    %221 = arith.addi %220, %c6_i32 : i32
    %222 = arith.index_cast %221 : i32 to index
    %223 = memref.load %arg1[%222] : memref<8xi32, #tpu.memory_space<smem>>
    %224 = arith.index_cast %223 : i32 to index
    %c0_69 = arith.constant 0 : index
    %c0_70 = arith.constant 0 : index
    %225 = vector.load %arg2[%224, %c0_69, %c0_70] : memref<16x1x384xf32, #tpu.memory_space<vmem>>, vector<1x1x384xf32>
    %226 = vector.shape_cast %225 : vector<1x1x384xf32> to vector<1x384xf32>
    %c0_71 = arith.constant 0 : index
    %c0_72 = arith.constant 0 : index
    %227 = vector.load %arg3[%c0_71, %c0_72] : memref<128x384xf32, #tpu.memory_space<vmem>>, vector<128x384xf32>
    %cst_73 = arith.constant dense<0.000000e+00> : vector<1x384xf32>
    %228 = tpu.matmul %218, %227, %cst_73 {dimension_numbers = #tpu.dot_dimension_numbers<[1], [0], [0], [1], [0, 0, 1, 1], [], []>} : vector<1x128xf32>, vector<128x384xf32>, vector<1x384xf32> -> vector<1x384xf32>
    %229 = vector.extract_strided_slice %226 {offsets = [0, 0], sizes = [1, 128], strides = [1, 1]} : vector<1x384xf32> to vector<1x128xf32>
    %230 = vector.extract_strided_slice %228 {offsets = [0, 0], sizes = [1, 128], strides = [1, 1]} : vector<1x384xf32> to vector<1x128xf32>
    %231 = arith.addf %229, %230 : vector<1x128xf32>
    %232 = arith.negf %231 : vector<1x128xf32>
    %233 = math.exp %232 : vector<1x128xf32>
    %cst_74 = arith.constant 1.000000e+00 : f32
    %234 = vector.broadcast %cst_74 : f32 to vector<1x128xf32>
    %235 = arith.addf %234, %233 : vector<1x128xf32>
    %236 = arith.divf %234, %235 : vector<1x128xf32>
    %237 = vector.extract_strided_slice %226 {offsets = [0, 128], sizes = [1, 128], strides = [1, 1]} : vector<1x384xf32> to vector<1x128xf32>
    %238 = vector.extract_strided_slice %228 {offsets = [0, 128], sizes = [1, 128], strides = [1, 1]} : vector<1x384xf32> to vector<1x128xf32>
    %239 = arith.addf %237, %238 : vector<1x128xf32>
    %240 = arith.negf %239 : vector<1x128xf32>
    %241 = math.exp %240 : vector<1x128xf32>
    %cst_75 = arith.constant 1.000000e+00 : f32
    %242 = vector.broadcast %cst_75 : f32 to vector<1x128xf32>
    %243 = arith.addf %242, %241 : vector<1x128xf32>
    %244 = arith.divf %242, %243 : vector<1x128xf32>
    %245 = vector.extract_strided_slice %226 {offsets = [0, 256], sizes = [1, 128], strides = [1, 1]} : vector<1x384xf32> to vector<1x128xf32>
    %246 = vector.extract_strided_slice %228 {offsets = [0, 256], sizes = [1, 128], strides = [1, 1]} : vector<1x384xf32> to vector<1x128xf32>
    %c0_76 = arith.constant 0 : index
    %c0_77 = arith.constant 0 : index
    %247 = vector.load %arg4[%c0_76, %c0_77] : memref<1x128xf32, #tpu.memory_space<vmem>>, vector<1x128xf32>
    %248 = arith.addf %246, %247 : vector<1x128xf32>
    %249 = arith.mulf %236, %248 : vector<1x128xf32>
    %250 = arith.addf %245, %249 : vector<1x128xf32>
    %251 = math.tanh %250 : vector<1x128xf32>
    %252 = arith.subf %218, %251 : vector<1x128xf32>
    %253 = arith.mulf %244, %252 : vector<1x128xf32>
    %254 = arith.addf %251, %253 : vector<1x128xf32>
    %c6 = arith.constant 6 : index
    %c0_78 = arith.constant 0 : index
    %255 = vector.load %arg10[%c6, %c0_78] : memref<8x128xf32, #tpu.memory_space<vmem>>, vector<1x128xf32>
    tpu.vector_store %arg10[%c6, %c0_78], %254 {strides = array<i32>} : memref<8x128xf32, #tpu.memory_space<vmem>>, vector<1x128xf32>,
    %c8_i32_79 = arith.constant 8 : i32
    %256 = arith.muli %arg0, %c8_i32_79 : i32
    %c7_i32 = arith.constant 7 : i32
    %257 = arith.addi %256, %c7_i32 : i32
    %258 = arith.index_cast %257 : i32 to index
    %259 = memref.load %arg1[%258] : memref<8xi32, #tpu.memory_space<smem>>
    %260 = arith.index_cast %259 : i32 to index
    %c0_80 = arith.constant 0 : index
    %c0_81 = arith.constant 0 : index
    %261 = vector.load %arg2[%260, %c0_80, %c0_81] : memref<16x1x384xf32, #tpu.memory_space<vmem>>, vector<1x1x384xf32>
    %262 = vector.shape_cast %261 : vector<1x1x384xf32> to vector<1x384xf32>
    %c0_82 = arith.constant 0 : index
    %c0_83 = arith.constant 0 : index
    %263 = vector.load %arg3[%c0_82, %c0_83] : memref<128x384xf32, #tpu.memory_space<vmem>>, vector<128x384xf32>
    %cst_84 = arith.constant dense<0.000000e+00> : vector<1x384xf32>
    %264 = tpu.matmul %254, %263, %cst_84 {dimension_numbers = #tpu.dot_dimension_numbers<[1], [0], [0], [1], [0, 0, 1, 1], [], []>} : vector<1x128xf32>, vector<128x384xf32>, vector<1x384xf32> -> vector<1x384xf32>
    %265 = vector.extract_strided_slice %262 {offsets = [0, 0], sizes = [1, 128], strides = [1, 1]} : vector<1x384xf32> to vector<1x128xf32>
    %266 = vector.extract_strided_slice %264 {offsets = [0, 0], sizes = [1, 128], strides = [1, 1]} : vector<1x384xf32> to vector<1x128xf32>
    %267 = arith.addf %265, %266 : vector<1x128xf32>
    %268 = arith.negf %267 : vector<1x128xf32>
    %269 = math.exp %268 : vector<1x128xf32>
    %cst_85 = arith.constant 1.000000e+00 : f32
    %270 = vector.broadcast %cst_85 : f32 to vector<1x128xf32>
    %271 = arith.addf %270, %269 : vector<1x128xf32>
    %272 = arith.divf %270, %271 : vector<1x128xf32>
    %273 = vector.extract_strided_slice %262 {offsets = [0, 128], sizes = [1, 128], strides = [1, 1]} : vector<1x384xf32> to vector<1x128xf32>
    %274 = vector.extract_strided_slice %264 {offsets = [0, 128], sizes = [1, 128], strides = [1, 1]} : vector<1x384xf32> to vector<1x128xf32>
    %275 = arith.addf %273, %274 : vector<1x128xf32>
    %276 = arith.negf %275 : vector<1x128xf32>
    %277 = math.exp %276 : vector<1x128xf32>
    %cst_86 = arith.constant 1.000000e+00 : f32
    %278 = vector.broadcast %cst_86 : f32 to vector<1x128xf32>
    %279 = arith.addf %278, %277 : vector<1x128xf32>
    %280 = arith.divf %278, %279 : vector<1x128xf32>
    %281 = vector.extract_strided_slice %262 {offsets = [0, 256], sizes = [1, 128], strides = [1, 1]} : vector<1x384xf32> to vector<1x128xf32>
    %282 = vector.extract_strided_slice %264 {offsets = [0, 256], sizes = [1, 128], strides = [1, 1]} : vector<1x384xf32> to vector<1x128xf32>
    %c0_87 = arith.constant 0 : index
    %c0_88 = arith.constant 0 : index
    %283 = vector.load %arg4[%c0_87, %c0_88] : memref<1x128xf32, #tpu.memory_space<vmem>>, vector<1x128xf32>
    %284 = arith.addf %282, %283 : vector<1x128xf32>
    %285 = arith.mulf %272, %284 : vector<1x128xf32>
    %286 = arith.addf %281, %285 : vector<1x128xf32>
    %287 = math.tanh %286 : vector<1x128xf32>
    %288 = arith.subf %254, %287 : vector<1x128xf32>
    %289 = arith.mulf %280, %288 : vector<1x128xf32>
    %290 = arith.addf %287, %289 : vector<1x128xf32>
    %c7 = arith.constant 7 : index
    %c0_89 = arith.constant 0 : index
    %291 = vector.load %arg10[%c7, %c0_89] : memref<8x128xf32, #tpu.memory_space<vmem>>, vector<1x128xf32>
    tpu.vector_store %arg10[%c7, %c0_89], %290 {strides = array<i32>} : memref<8x128xf32, #tpu.memory_space<vmem>>, vector<1x128xf32>,
    %c0_90 = arith.constant 0 : index
    %c0_91 = arith.constant 0 : index
    %292 = vector.load %arg9[%c0_90, %c0_91] : memref<1x128xf32, #tpu.memory_space<vmem>>, vector<1x128xf32>
    tpu.vector_store %arg9[%c0_90, %c0_91], %290 {strides = array<i32>} : memref<1x128xf32, #tpu.memory_space<vmem>>, vector<1x128xf32>,
    %c0_92 = arith.constant 0 : index
    %c0_93 = arith.constant 0 : index
    %293 = vector.load %arg10[%c0_92, %c0_93] : memref<8x128xf32, #tpu.memory_space<vmem>>, vector<8x128xf32>
    %c0_94 = arith.constant 0 : index
    %c0_95 = arith.constant 0 : index
    %294 = vector.load %arg5[%c0_94, %c0_95] : memref<128x128xf32, #tpu.memory_space<vmem>>, vector<128x128xf32>
    %cst_96 = arith.constant dense<0.000000e+00> : vector<8x128xf32>
    %295 = tpu.matmul %293, %294, %cst_96 {dimension_numbers = #tpu.dot_dimension_numbers<[1], [0], [0], [1], [0, 0, 1, 1], [], []>} : vector<8x128xf32>, vector<128x128xf32>, vector<8x128xf32> -> vector<8x128xf32>
    %c0_97 = arith.constant 0 : index
    %c0_98 = arith.constant 0 : index
    %296 = vector.load %arg6[%c0_97, %c0_98] : memref<1x128xf32, #tpu.memory_space<vmem>>, vector<1x128xf32>
    %297 = vector.broadcast %296 : vector<1x128xf32> to vector<8x128xf32>
    %298 = arith.addf %295, %297 : vector<8x128xf32>
    %c0_99 = arith.constant 0 : index
    %c0_100 = arith.constant 0 : index
    %299 = vector.load %arg8[%c0_99, %c0_100] : memref<8x128xf32, #tpu.memory_space<vmem>>, vector<8x128xf32>
    tpu.vector_store %arg8[%c0_99, %c0_100], %298 {strides = array<i32>} : memref<8x128xf32, #tpu.memory_space<vmem>>, vector<8x128xf32>,
    return
  }
  func.func @transform_0(%arg0: i32, %arg1: memref<8xi32, #tpu.memory_space<smem>>) -> (i32, i32, i32) {
    %c0_i32 = arith.constant 0 : i32
    %c0_i32_0 = arith.constant 0 : i32
    %c0_i32_1 = arith.constant 0 : i32
    %c0_i32_2 = arith.constant 0 : i32
    return %c0_i32, %c0_i32_0, %c0_i32_1 : i32, i32, i32
  }
  func.func @transform_1(%arg0: i32, %arg1: memref<8xi32, #tpu.memory_space<smem>>) -> (i32, i32) {
    %c0_i32 = arith.constant 0 : i32
    %c0_i32_0 = arith.constant 0 : i32
    %c0_i32_1 = arith.constant 0 : i32
    return %c0_i32, %c0_i32_0 : i32, i32
  }
  func.func @transform_2(%arg0: i32, %arg1: memref<8xi32, #tpu.memory_space<smem>>) -> (i32, i32) {
    %c0_i32 = arith.constant 0 : i32
    %c0_i32_0 = arith.constant 0 : i32
    %c0_i32_1 = arith.constant 0 : i32
    return %c0_i32, %c0_i32_0 : i32, i32
  }
  func.func @transform_3(%arg0: i32, %arg1: memref<8xi32, #tpu.memory_space<smem>>) -> (i32, i32) {
    %c0_i32 = arith.constant 0 : i32
    %c0_i32_0 = arith.constant 0 : i32
    %c0_i32_1 = arith.constant 0 : i32
    return %c0_i32, %c0_i32_0 : i32, i32
  }
  func.func @transform_4(%arg0: i32, %arg1: memref<8xi32, #tpu.memory_space<smem>>) -> (i32, i32) {
    %c0_i32 = arith.constant 0 : i32
    %c0_i32_0 = arith.constant 0 : i32
    %c0_i32_1 = arith.constant 0 : i32
    return %c0_i32, %c0_i32_0 : i32, i32
  }
  func.func @transform_5(%arg0: i32, %arg1: memref<8xi32, #tpu.memory_space<smem>>) -> (i32, i32) {
    %c0_i32 = arith.constant 0 : i32
    %c0_i32_0 = arith.constant 0 : i32
    %c0_i32_1 = arith.constant 0 : i32
    return %c0_i32, %c0_i32_0 : i32, i32
  }
  func.func @transform_6(%arg0: i32, %arg1: memref<8xi32, #tpu.memory_space<smem>>) -> (i32, i32) {
    %c0_i32 = arith.constant 0 : i32
    %c0_i32_0 = arith.constant 0 : i32
    return %arg0, %c0_i32 : i32, i32
  }
  func.func @transform_7(%arg0: i32, %arg1: memref<8xi32, #tpu.memory_space<smem>>) -> (i32, i32) {
    %c0_i32 = arith.constant 0 : i32
    %c0_i32_0 = arith.constant 0 : i32
    %c0_i32_1 = arith.constant 0 : i32
    return %c0_i32, %c0_i32_0 : i32, i32
  }
}

</mosaic_0001>

<llo_original>
// kernel: rnn_forward_seq.1
$region0: #{rnn_forward_seq.1}
  #allocation0 [shape = 'u32[]', space=smem, size = 0x4, offset = 0x4, fixed_abs, tag = 'smem constant byte address 0x4 - core index']
  #allocation1 [shape = 'u32[144,128]{1,0:T(1,128)}', space=vmem, size = 0x12000, scoped, tag = 'internal scratch']
  #allocation2 [shape = 'f32[8,128]{1,0:T(8,128)}', space=vmem, size = 0x1000, scoped, tag = 'scratch operand']
  #allocation3 [shape = 's32[1]{0}', space=sflag, size = 0x4, scoped, tag = 'scoped memory for rnn_forward_seq.1']
  #allocation4 [shape = 'u8[512]{0}', space=smem, size = 0x200, scoped, tag = 'prefetched SMEM operand 0']
  %s0 = inlined_call_operand.vmem [shape: s32[8], index: 0, kind: input, shape index: {}]
  %s1 = inlined_call_operand.hbm [shape: f32[16,1,384], index: 1, kind: input, shape index: {}]
  %s2 = inlined_call_operand.hbm [shape: f32[128,384], index: 2, kind: input, shape index: {}]
  %s3 = inlined_call_operand.vmem [shape: f32[1,128], index: 3, kind: input, shape index: {}]
  %s4 = inlined_call_operand.hbm [shape: f32[128,128], index: 4, kind: input, shape index: {}]
  %s5 = inlined_call_operand.vmem [shape: f32[1,128], index: 5, kind: input, shape index: {}]
  %s6 = inlined_call_operand.vmem [shape: f32[1,128], index: 6, kind: input, shape index: {}]
  %s7 = inlined_call_operand.hbm [shape: f32[8,128], index: 7, kind: output, shape index: {0}]
  %s8 = inlined_call_operand.vmem [shape: f32[1,128], index: 8, kind: output, shape index: {1}]
  %9 = xla_tuple %s7, %s8
  %s10 = sld [smem:[#allocation0]]
  $region58: #{rnn_forward_seq.1} parent=0
    _
  %s12 = ssub.s32 1, %s10
  %s13 = scalar_select 0, %s12, %s10
  %s14 = sshll.u32 %s0, 4
  %s15 = int_to_ptr.vmem [resolvable:$true] %s14
  %17 = dma.vmem_to_smem %s15, 16, [#allocation4], [#allocation3]
  %18 = dma.done [#allocation3], 16
  %19 = sfence
  $region1: #{rnn_forward_seq.1} parent=0
    #allocation5 [shape = 'u8[24576]{0}', space=vmem, size = 0x6000, scoped, tag = 'input window, operand 1, single buffered']
    #allocation6 [shape = 's32[1]{0}', space=sflag, size = 0x4, scoped, tag = 'scoped memory for rnn_forward_seq.1']
    #allocation7 [shape = 's32[1]{0}', space=sflag, size = 0x4, scoped, tag = 'scoped memory for rnn_forward_seq.1']
    #allocation8 [shape = 'u8[196608]{0}', space=vmem, size = 0x30000, scoped, tag = 'input window, operand 2, single buffered']
    #allocation9 [shape = 's32[1]{0}', space=sflag, size = 0x4, scoped, tag = 'scoped memory for rnn_forward_seq.1']
    #allocation10 [shape = 'u8[65536]{0}', space=vmem, size = 0x10000, scoped, tag = 'input window, operand 4, single buffered']
    #allocation11 [shape = 'u8[4096]{0}', space=vmem, size = 0x1000, scoped, tag = 'output window, operand 0, single buffered']
    %20 = vsyncpa [#allocation6], 0
    %21 = vsyncpa [#allocation9], 0
    %22 = vsyncpa [#allocation7], 0
    // Predicated region
    $region2: #{rnn_forward_seq.1} parent=1 // pred_check
      _
    $region3: #{rnn_forward_seq.1} parent=1 // pred_check_branch
      %24 = sbr.rel (0) target = $region5
    $region4: #{rnn_forward_seq.1} parent=1 // pred_region
      %s26 = ssub.s32 768, 768
      %27 = vsyncadd [#allocation6], %s26
      %s28 = sshll.u32 [#allocation5], 4
      %s29 = int_to_ptr.vmem [resolvable:$true] %s28
      %34 = dma.hbm_to_vmem [thread:$0]  %s1, 768, %s29, [#allocation6], 48, 48, 3
    $region5: #{rnn_forward_seq.1} parent=1 // pred_fallthru
      _
    // Predicated region
    $region6: #{rnn_forward_seq.1} parent=1 // pred_check
      _
    $region7: #{rnn_forward_seq.1} parent=1 // pred_check_branch
      %36 = sbr.rel (0) target = $region9
    $region8: #{rnn_forward_seq.1} parent=1 // pred_region
      %s38 = ssub.s32 6144, 6144
      %39 = vsyncadd [#allocation9], %s38
      %s40 = sshll.u32 [#allocation8], 4
      %s41 = int_to_ptr.vmem [resolvable:$true] %s40
      %46 = dma.hbm_to_vmem [thread:$0]  %s2, 6144, %s41, [#allocation9], 384, 384, 24
    $region9: #{rnn_forward_seq.1} parent=1 // pred_fallthru
      _
    // Predicated region
    $region10: #{rnn_forward_seq.1} parent=1 // pred_check
      _
    $region11: #{rnn_forward_seq.1} parent=1 // pred_check_branch
      %48 = sbr.rel (0) target = $region13
    $region12: #{rnn_forward_seq.1} parent=1 // pred_region
      _
    $region13: #{rnn_forward_seq.1} parent=1 // pred_fallthru
      _
    // Predicated region
    $region14: #{rnn_forward_seq.1} parent=1 // pred_check
      _
    $region15: #{rnn_forward_seq.1} parent=1 // pred_check_branch
      %50 = sbr.rel (0) target = $region17
    $region16: #{rnn_forward_seq.1} parent=1 // pred_region
      %s52 = ssub.s32 2048, 2048
      %53 = vsyncadd [#allocation9], %s52
      %s54 = sshll.u32 [#allocation10], 4
      %s55 = int_to_ptr.vmem [resolvable:$true] %s54
      %60 = dma.hbm_to_vmem [thread:$0]  %s4, 2048, %s55, [#allocation9], 128, 128, 8
    $region17: #{rnn_forward_seq.1} parent=1 // pred_fallthru
      _
    // Predicated region
    $region18: #{rnn_forward_seq.1} parent=1 // pred_check
      _
    $region19: #{rnn_forward_seq.1} parent=1 // pred_check_branch
      %62 = sbr.rel (0) target = $region21
    $region20: #{rnn_forward_seq.1} parent=1 // pred_region
      _
    $region21: #{rnn_forward_seq.1} parent=1 // pred_fallthru
      _
    // Predicated region
    $region22: #{rnn_forward_seq.1} parent=1 // pred_check
      _
    $region23: #{rnn_forward_seq.1} parent=1 // pred_check_branch
      %64 = sbr.rel (0) target = $region25
    $region24: #{rnn_forward_seq.1} parent=1 // pred_region
      _
    $region25: #{rnn_forward_seq.1} parent=1 // pred_fallthru
      _
    // Predicated region
    $region26: #{rnn_forward_seq.1} parent=1 // pred_check
      _
    $region27: #{rnn_forward_seq.1} parent=1 // pred_check_branch
      %66 = sbr.rel (0) target = $region29
    $region28: #{rnn_forward_seq.1} parent=1 // pred_region
      %67 = dma.done [#allocation6], 768
    $region29: #{rnn_forward_seq.1} parent=1 // pred_fallthru
      _
    // Predicated region
    $region30: #{rnn_forward_seq.1} parent=1 // pred_check
      _
    $region31: #{rnn_forward_seq.1} parent=1 // pred_check_branch
      %69 = sbr.rel (0) target = $region33
    $region32: #{rnn_forward_seq.1} parent=1 // pred_region
      %70 = dma.done [#allocation9], 6144
    $region33: #{rnn_forward_seq.1} parent=1 // pred_fallthru
      _
    // Predicated region
    $region34: #{rnn_forward_seq.1} parent=1 // pred_check
      _
    $region35: #{rnn_forward_seq.1} parent=1 // pred_check_branch
      %72 = sbr.rel (0) target = $region37
    $region36: #{rnn_forward_seq.1} parent=1 // pred_region
      %73 = dma.done [#allocation9], 2048
    $region37: #{rnn_forward_seq.1} parent=1 // pred_fallthru
      _
    %p74 = scmp.eq.s32.totalorder 0, 0
    // Predicated region
    $region38: #{rnn_forward_seq.1} parent=1 // pred_check
      %p75 = pneg %p74
    $region39: #{rnn_forward_seq.1} parent=1 // pred_check_branch
      %77 = sbr.rel (%p75) target = $region41
    $region40: #{rnn_forward_seq.1} parent=1 // pred_region
      %v78 = vld [vmem:[%s6] sm:$0x1]
      %79 = vst [vmem:[%s8] sm:$0x1] %v78
    $region41: #{rnn_forward_seq.1} parent=1 // pred_fallthru
      _
    %v80 = vld [vmem:[%s8] sm:$0x1]
    %s81 = smul.u32 0, 8
    %s82 = sld [smem:[#allocation4 + %s81]]
    %s83 = smul.u32 %s82, 3
    %s84 = scalar_lea.vmem [#allocation5], %s83
    %v85 = vld [vmem:[%s84] sm:$0x7]
    %v86 = vld [vmem:[#allocation8] sm:$0xff]
    %v87 = vld [vmem:[#allocation8 + $0x8] sm:$0xff]
    %v88 = vld [vmem:[#allocation8 + $0x10] sm:$0xff]
    %v89 = vld [vmem:[#allocation8 + $0x18] sm:$0xff]
    %v90 = vld [vmem:[#allocation8 + $0x20] sm:$0xff]
    %v91 = vld [vmem:[#allocation8 + $0x28] sm:$0xff]
    %v92 = vld [vmem:[#allocation8 + $0x30] sm:$0xff]
    %v93 = vld [vmem:[#allocation8 + $0x38] sm:$0xff]
    %v94 = vld [vmem:[#allocation8 + $0x40] sm:$0xff]
    %v95 = vld [vmem:[#allocation8 + $0x48] sm:$0xff]
    %v96 = vld [vmem:[#allocation8 + $0x50] sm:$0xff]
    %v97 = vld [vmem:[#allocation8 + $0x58] sm:$0xff]
    %v98 = vld [vmem:[#allocation8 + $0x60] sm:$0xff]
    %v99 = vld [vmem:[#allocation8 + $0x68] sm:$0xff]
    %v100 = vld [vmem:[#allocation8 + $0x70] sm:$0xff]
    %v101 = vld [vmem:[#allocation8 + $0x78] sm:$0xff]
    %v102 = vld [vmem:[#allocation8 + $0x80] sm:$0xff]
    %v103 = vld [vmem:[#allocation8 + $0x88] sm:$0xff]
    %v104 = vld [vmem:[#allocation8 + $0x90] sm:$0xff]
    %v105 = vld [vmem:[#allocation8 + $0x98] sm:$0xff]
    %v106 = vld [vmem:[#allocation8 + $0xa0] sm:$0xff]
    %v107 = vld [vmem:[#allocation8 + $0xa8] sm:$0xff]
    %v108 = vld [vmem:[#allocation8 + $0xb0] sm:$0xff]
    %v109 = vld [vmem:[#allocation8 + $0xb8] sm:$0xff]
    %v110 = vld [vmem:[#allocation8 + $0xc0] sm:$0xff]
    %v111 = vld [vmem:[#allocation8 + $0xc8] sm:$0xff]
    %v112 = vld [vmem:[#allocation8 + $0xd0] sm:$0xff]
    %v113 = vld [vmem:[#allocation8 + $0xd8] sm:$0xff]
    %v114 = vld [vmem:[#allocation8 + $0xe0] sm:$0xff]
    %v115 = vld [vmem:[#allocation8 + $0xe8] sm:$0xff]
    %v116 = vld [vmem:[#allocation8 + $0xf0] sm:$0xff]
    %v117 = vld [vmem:[#allocation8 + $0xf8] sm:$0xff]
    %v118 = vld [vmem:[#allocation8 + $0x100] sm:$0xff]
    %v119 = vld [vmem:[#allocation8 + $0x108] sm:$0xff]
    %v120 = vld [vmem:[#allocation8 + $0x110] sm:$0xff]
    %v121 = vld [vmem:[#allocation8 + $0x118] sm:$0xff]
    %v122 = vld [vmem:[#allocation8 + $0x120] sm:$0xff]
    %v123 = vld [vmem:[#allocation8 + $0x128] sm:$0xff]
    %v124 = vld [vmem:[#allocation8 + $0x130] sm:$0xff]
    %v125 = vld [vmem:[#allocation8 + $0x138] sm:$0xff]
    %v126 = vld [vmem:[#allocation8 + $0x140] sm:$0xff]
    %v127 = vld [vmem:[#allocation8 + $0x148] sm:$0xff]
    %v128 = vld [vmem:[#allocation8 + $0x150] sm:$0xff]
    %v129 = vld [vmem:[#allocation8 + $0x158] sm:$0xff]
    %v130 = vld [vmem:[#allocation8 + $0x160] sm:$0xff]
    %v131 = vld [vmem:[#allocation8 + $0x168] sm:$0xff]
    %v132 = vld [vmem:[#allocation8 + $0x170] sm:$0xff]
    %v133 = vld [vmem:[#allocation8 + $0x178] sm:$0xff]
    %134 = vmatprep.subr.mxu0 %v132
    %135 = vmatpush1.msra.mxu0 %v131
    %136 = vmatprep.subr.mxu0 %v129
    %137 = vmatpush1.msra.mxu0 %v128
    %138 = vmatprep.subr.mxu0 %v126
    %139 = vmatpush1.msra.mxu0 %v125
    %140 = vmatprep.subr.mxu0 %v123
    %141 = vmatpush1.msra.mxu0 %v122
    %142 = vmatprep.subr.mxu0 %v120
    %143 = vmatpush1.msra.mxu0 %v119
    %144 = vmatprep.subr.mxu0 %v117
    %145 = vmatpush1.msra.mxu0 %v116
    %146 = vmatprep.subr.mxu0 %v114
    %147 = vmatpush1.msra.mxu0 %v113
    %148 = vmatprep.subr.mxu0 %v111
    %149 = vmatpush1.msra.mxu0 %v110
    %150 = vmatprep.subr.mxu0 %v108
    %151 = vmatpush1.msra.mxu0 %v107
    %152 = vmatprep.subr.mxu0 %v105
    %153 = vmatpush1.msra.mxu0 %v104
    %154 = vmatprep.subr.mxu0 %v102
    %155 = vmatpush1.msra.mxu0 %v101
    %156 = vmatprep.subr.mxu0 %v99
    %157 = vmatpush1.msra.mxu0 %v98
    %158 = vmatprep.subr.mxu0 %v96
    %159 = vmatpush1.msra.mxu0 %v95
    %160 = vmatprep.subr.mxu0 %v93
    %161 = vmatpush1.msra.mxu0 %v92
    %162 = vmatprep.subr.mxu0 %v90
    %163 = vmatpush1.msra.mxu0 %v89
    %164 = vmatprep.subr.mxu0 %v87
    %165 = vmatpush1.msra.mxu0 %v86
    %166 = vmatprep.subr.mxu0 0.0
    %167 = vmatpush2.msra.mxu0 0.0
    %168 = vmatprep.subr.mxu0 0.0
    %169 = vmatpush2.msra.mxu0 0.0
    %170 = vmatprep.subr.mxu0 0.0
    %171 = vmatpush2.msra.mxu0 0.0
    %172 = vmatprep.subr.mxu0 0.0
    %173 = vmatpush2.msra.mxu0 0.0
    %174 = vmatprep.subr.mxu0 0.0
    %175 = vmatpush2.msra.mxu0 0.0
    %176 = vmatprep.subr.mxu0 0.0
    %177 = vmatpush2.msra.mxu0 0.0
    %178 = vmatprep.subr.mxu0 0.0
    %179 = vmatpush2.msra.mxu0 0.0
    %180 = vmatprep.subr.mxu0 0.0
    %181 = vmatpush2.msra.mxu0 0.0
    %182 = vmatprep.subr.mxu0 0.0
    %183 = vmatpush2.msra.mxu0 0.0
    %184 = vmatprep.subr.mxu0 0.0
    %185 = vmatpush2.msra.mxu0 0.0
    %186 = vmatprep.subr.mxu0 0.0
    %187 = vmatpush2.msra.mxu0 0.0
    %188 = vmatprep.subr.mxu0 0.0
    %189 = vmatpush2.msra.mxu0 0.0
    %190 = vmatprep.subr.mxu0 0.0
    %191 = vmatpush2.msra.mxu0 0.0
    %192 = vmatprep.subr.mxu0 0.0
    %193 = vmatpush2.msra.mxu0 0.0
    %194 = vmatprep.subr.mxu0 0.0
    %195 = vmatpush2.msra.mxu0 0.0
    %196 = vmatprep.subr.mxu0 0.0
    %197 = vmatpush2.msra.mxu0 0.0
    %198 = vmatprep.mubr.f32.mxu0 0.0
    %199 = vmatmul.mubr.f32.gmra.mxu0 %v80
    %v200 = vpop.f32.mrf.mxu0
    %v201 = vadd.f32 0.0, %v200
    %v202 = vpop.f32.mrf.mxu0
    %v203 = vadd.f32 0.0, %v202
    %204 = vdwg.mxu0
    %205 = vmatprep.subr.mxu0 0.0
    %206 = vmatpush1.msra.mxu0 %v133
    %207 = vmatprep.subr.mxu0 0.0
    %208 = vmatpush1.msra.mxu0 %v130
    %209 = vmatprep.subr.mxu0 0.0
    %210 = vmatpush1.msra.mxu0 %v127
    %211 = vmatprep.subr.mxu0 0.0
    %212 = vmatpush1.msra.mxu0 %v124
    %213 = vmatprep.subr.mxu0 0.0
    %214 = vmatpush1.msra.mxu0 %v121
    %215 = vmatprep.subr.mxu0 0.0
    %216 = vmatpush1.msra.mxu0 %v118
    %217 = vmatprep.subr.mxu0 0.0
    %218 = vmatpush1.msra.mxu0 %v115
    %219 = vmatprep.subr.mxu0 0.0
    %220 = vmatpush1.msra.mxu0 %v112
    %221 = vmatprep.subr.mxu0 0.0
    %222 = vmatpush1.msra.mxu0 %v109
    %223 = vmatprep.subr.mxu0 0.0
    %224 = vmatpush1.msra.mxu0 %v106
    %225 = vmatprep.subr.mxu0 0.0
    %226 = vmatpush1.msra.mxu0 %v103
    %227 = vmatprep.subr.mxu0 0.0
    %228 = vmatpush1.msra.mxu0 %v100
    %229 = vmatprep.subr.mxu0 0.0
    %230 = vmatpush1.msra.mxu0 %v97
    %231 = vmatprep.subr.mxu0 0.0
    %232 = vmatpush1.msra.mxu0 %v94
    %233 = vmatprep.subr.mxu0 0.0
    %234 = vmatpush1.msra.mxu0 %v91
    %235 = vmatprep.subr.mxu0 0.0
    %236 = vmatpush1.msra.mxu0 %v88
    %237 = vmatprep.subr.mxu0 0.0
    %238 = vmatpush2.msra.mxu0 0.0
    %239 = vmatprep.subr.mxu0 0.0
    %240 = vmatpush2.msra.mxu0 0.0
    %241 = vmatprep.subr.mxu0 0.0
    %242 = vmatpush2.msra.mxu0 0.0
    %243 = vmatprep.subr.mxu0 0.0
    %244 = vmatpush2.msra.mxu0 0.0
    %245 = vmatprep.subr.mxu0 0.0
    %246 = vmatpush2.msra.mxu0 0.0
    %247 = vmatprep.subr.mxu0 0.0
    %248 = vmatpush2.msra.mxu0 0.0
    %249 = vmatprep.subr.mxu0 0.0
    %250 = vmatpush2.msra.mxu0 0.0
    %251 = vmatprep.subr.mxu0 0.0
    %252 = vmatpush2.msra.mxu0 0.0
    %253 = vmatprep.subr.mxu0 0.0
    %254 = vmatpush2.msra.mxu0 0.0
    %255 = vmatprep.subr.mxu0 0.0
    %256 = vmatpush2.msra.mxu0 0.0
    %257 = vmatprep.subr.mxu0 0.0
    %258 = vmatpush2.msra.mxu0 0.0
    %259 = vmatprep.subr.mxu0 0.0
    %260 = vmatpush2.msra.mxu0 0.0
    %261 = vmatprep.subr.mxu0 0.0
    %262 = vmatpush2.msra.mxu0 0.0
    %263 = vmatprep.subr.mxu0 0.0
    %264 = vmatpush2.msra.mxu0 0.0
    %265 = vmatprep.subr.mxu0 0.0
    %266 = vmatpush2.msra.mxu0 0.0
    %267 = vmatprep.subr.mxu0 0.0
    %268 = vmatpush2.msra.mxu0 0.0
    %269 = vmatprep.mubr.f32.mxu0 0.0
    %270 = vmatmul.mubr.f32.gmra.mxu0 %v80
    %v271 = vpop.f32.mrf.mxu0
    %v272 = vadd.f32 0.0, %v271
    %v273 = vpop.f32.mrf.mxu0
    %274 = vdwg.mxu0
    %v275 = vadd.f32 %v85, %v201
    %v276 = vxor.u32 %v275, 2147483648
    %v277 = vmul.f32 %v276, 1.442695
    %v278 = vpow.pop %v277
    %v279 = vadd.f32 %v278, 1.0
    %v280 = vrcp.pop %v279
    %v281 = vmul.f32 1.0, %v280
    %v283 = vrot.slane %v85, 1
    %v285 = vadd.f32 %v283, %v203
    %v286 = vxor.u32 %v285, 2147483648
    %v287 = vmul.f32 %v286, 1.442695
    %v288 = vpow.pop %v287
    %v289 = vadd.f32 %v288, 1.0
    %v290 = vrcp.pop %v289
    %v291 = vmul.f32 1.0, %v290
    %v292 = vld [vmem:[%s3] sm:$0x1]
    %v293 = vadd.f32 %v272, %v292
    %v294 = vmul.f32 %v281, %v293
    %v295 = vrot.slane %v85, 2
    %v297 = vadd.f32 %v295, %v294
    %v298 = vtanh.pop %v297
    %v299 = vsub.f32 %v80, %v298
    %v300 = vmul.f32 %v291, %v299
    %v301 = vadd.f32 %v298, %v300
    %302 = vst [vmem:[#allocation2] sm:$0x1] %v301
    %s303 = sadd.s32 %s81, 1
    %s304 = sld [smem:[#allocation4 + %s303]]
    %s305 = smul.u32 %s304, 3
    %s306 = scalar_lea.vmem [#allocation5], %s305
    %v307 = vld [vmem:[%s306] sm:$0x7]
    %v308 = vld [vmem:[#allocation8] sm:$0xff]
    %v309 = vld [vmem:[#allocation8 + $0x8] sm:$0xff]
    %v310 = vld [vmem:[#allocation8 + $0x10] sm:$0xff]
    %v311 = vld [vmem:[#allocation8 + $0x18] sm:$0xff]
    %v312 = vld [vmem:[#allocation8 + $0x20] sm:$0xff]
    %v313 = vld [vmem:[#allocation8 + $0x28] sm:$0xff]
    %v314 = vld [vmem:[#allocation8 + $0x30] sm:$0xff]
    %v315 = vld [vmem:[#allocation8 + $0x38] sm:$0xff]
    %v316 = vld [vmem:[#allocation8 + $0x40] sm:$0xff]
    %v317 = vld [vmem:[#allocation8 + $0x48] sm:$0xff]
    %v318 = vld [vmem:[#allocation8 + $0x50] sm:$0xff]
    %v319 = vld [vmem:[#allocation8 + $0x58] sm:$0xff]
    %v320 = vld [vmem:[#allocation8 + $0x60] sm:$0xff]
    %v321 = vld [vmem:[#allocation8 + $0x68] sm:$0xff]
    %v322 = vld [vmem:[#allocation8 + $0x70] sm:$0xff]
    %v323 = vld [vmem:[#allocation8 + $0x78] sm:$0xff]
    %v324 = vld [vmem:[#allocation8 + $0x80] sm:$0xff]
    %v325 = vld [vmem:[#allocation8 + $0x88] sm:$0xff]
    %v326 = vld [vmem:[#allocation8 + $0x90] sm:$0xff]
    %v327 = vld [vmem:[#allocation8 + $0x98] sm:$0xff]
    %v328 = vld [vmem:[#allocation8 + $0xa0] sm:$0xff]
    %v329 = vld [vmem:[#allocation8 + $0xa8] sm:$0xff]
    %v330 = vld [vmem:[#allocation8 + $0xb0] sm:$0xff]
    %v331 = vld [vmem:[#allocation8 + $0xb8] sm:$0xff]
    %v332 = vld [vmem:[#allocation8 + $0xc0] sm:$0xff]
    %v333 = vld [vmem:[#allocation8 + $0xc8] sm:$0xff]
    %v334 = vld [vmem:[#allocation8 + $0xd0] sm:$0xff]
    %v335 = vld [vmem:[#allocation8 + $0xd8] sm:$0xff]
    %v336 = vld [vmem:[#allocation8 + $0xe0] sm:$0xff]
    %v337 = vld [vmem:[#allocation8 + $0xe8] sm:$0xff]
    %v338 = vld [vmem:[#allocation8 + $0xf0] sm:$0xff]
    %v339 = vld [vmem:[#allocation8 + $0xf8] sm:$0xff]
    %v340 = vld [vmem:[#allocation8 + $0x100] sm:$0xff]
    %v341 = vld [vmem:[#allocation8 + $0x108] sm:$0xff]
    %v342 = vld [vmem:[#allocation8 + $0x110] sm:$0xff]
    %v343 = vld [vmem:[#allocation8 + $0x118] sm:$0xff]
    %v344 = vld [vmem:[#allocation8 + $0x120] sm:$0xff]
    %v345 = vld [vmem:[#allocation8 + $0x128] sm:$0xff]
    %v346 = vld [vmem:[#allocation8 + $0x130] sm:$0xff]
    %v347 = vld [vmem:[#allocation8 + $0x138] sm:$0xff]
    %v348 = vld [vmem:[#allocation8 + $0x140] sm:$0xff]
    %v349 = vld [vmem:[#allocation8 + $0x148] sm:$0xff]
    %v350 = vld [vmem:[#allocation8 + $0x150] sm:$0xff]
    %v351 = vld [vmem:[#allocation8 + $0x158] sm:$0xff]
    %v352 = vld [vmem:[#allocation8 + $0x160] sm:$0xff]
    %v353 = vld [vmem:[#allocation8 + $0x168] sm:$0xff]
    %v354 = vld [vmem:[#allocation8 + $0x170] sm:$0xff]
    %v355 = vld [vmem:[#allocation8 + $0x178] sm:$0xff]
    %356 = vmatprep.subr.mxu0 %v354
    %357 = vmatpush1.msra.mxu0 %v353
    %358 = vmatprep.subr.mxu0 %v351
    %359 = vmatpush1.msra.mxu0 %v350
    %360 = vmatprep.subr.mxu0 %v348
    %361 = vmatpush1.msra.mxu0 %v347
    %362 = vmatprep.subr.mxu0 %v345
    %363 = vmatpush1.msra.mxu0 %v344
    %364 = vmatprep.subr.mxu0 %v342
    %365 = vmatpush1.msra.mxu0 %v341
    %366 = vmatprep.subr.mxu0 %v339
    %367 = vmatpush1.msra.mxu0 %v338
    %368 = vmatprep.subr.mxu0 %v336
    %369 = vmatpush1.msra.mxu0 %v335
    %370 = vmatprep.subr.mxu0 %v333
    %371 = vmatpush1.msra.mxu0 %v332
    %372 = vmatprep.subr.mxu0 %v330
    %373 = vmatpush1.msra.mxu0 %v329
    %374 = vmatprep.subr.mxu0 %v327
    %375 = vmatpush1.msra.mxu0 %v326
    %376 = vmatprep.subr.mxu0 %v324
    %377 = vmatpush1.msra.mxu0 %v323
    %378 = vmatprep.subr.mxu0 %v321
    %379 = vmatpush1.msra.mxu0 %v320
    %380 = vmatprep.subr.mxu0 %v318
    %381 = vmatpush1.msra.mxu0 %v317
    %382 = vmatprep.subr.mxu0 %v315
    %383 = vmatpush1.msra.mxu0 %v314
    %384 = vmatprep.subr.mxu0 %v312
    %385 = vmatpush1.msra.mxu0 %v311
    %386 = vmatprep.subr.mxu0 %v309
    %387 = vmatpush1.msra.mxu0 %v308
    %388 = vmatprep.subr.mxu0 0.0
    %389 = vmatpush2.msra.mxu0 0.0
    %390 = vmatprep.subr.mxu0 0.0
    %391 = vmatpush2.msra.mxu0 0.0
    %392 = vmatprep.subr.mxu0 0.0
    %393 = vmatpush2.msra.mxu0 0.0
    %394 = vmatprep.subr.mxu0 0.0
    %395 = vmatpush2.msra.mxu0 0.0
    %396 = vmatprep.subr.mxu0 0.0
    %397 = vmatpush2.msra.mxu0 0.0
    %398 = vmatprep.subr.mxu0 0.0
    %399 = vmatpush2.msra.mxu0 0.0
    %400 = vmatprep.subr.mxu0 0.0
    %401 = vmatpush2.msra.mxu0 0.0
    %402 = vmatprep.subr.mxu0 0.0
    %403 = vmatpush2.msra.mxu0 0.0
    %404 = vmatprep.subr.mxu0 0.0
    %405 = vmatpush2.msra.mxu0 0.0
    %406 = vmatprep.subr.mxu0 0.0
    %407 = vmatpush2.msra.mxu0 0.0
    %408 = vmatprep.subr.mxu0 0.0
    %409 = vmatpush2.msra.mxu0 0.0
    %410 = vmatprep.subr.mxu0 0.0
    %411 = vmatpush2.msra.mxu0 0.0
    %412 = vmatprep.subr.mxu0 0.0
    %413 = vmatpush2.msra.mxu0 0.0
    %414 = vmatprep.subr.mxu0 0.0
    %415 = vmatpush2.msra.mxu0 0.0
    %416 = vmatprep.subr.mxu0 0.0
    %417 = vmatpush2.msra.mxu0 0.0
    %418 = vmatprep.subr.mxu0 0.0
    %419 = vmatpush2.msra.mxu0 0.0
    %420 = vmatprep.mubr.f32.mxu0 0.0
    %421 = vmatmul.mubr.f32.gmra.mxu0 %v301
    %v422 = vpop.f32.mrf.mxu0
    %v423 = vadd.f32 0.0, %v422
    %v424 = vpop.f32.mrf.mxu0
    %v425 = vadd.f32 0.0, %v424
    %426 = vdwg.mxu0
    %427 = vmatprep.subr.mxu0 0.0
    %428 = vmatpush1.msra.mxu0 %v355
    %429 = vmatprep.subr.mxu0 0.0
    %430 = vmatpush1.msra.mxu0 %v352
    %431 = vmatprep.subr.mxu0 0.0
    %432 = vmatpush1.msra.mxu0 %v349
    %433 = vmatprep.subr.mxu0 0.0
    %434 = vmatpush1.msra.mxu0 %v346
    %435 = vmatprep.subr.mxu0 0.0
    %436 = vmatpush1.msra.mxu0 %v343
    %437 = vmatprep.subr.mxu0 0.0
    %438 = vmatpush1.msra.mxu0 %v340
    %439 = vmatprep.subr.mxu0 0.0
    %440 = vmatpush1.msra.mxu0 %v337
    %441 = vmatprep.subr.mxu0 0.0
    %442 = vmatpush1.msra.mxu0 %v334
    %443 = vmatprep.subr.mxu0 0.0
    %444 = vmatpush1.msra.mxu0 %v331
    %445 = vmatprep.subr.mxu0 0.0
    %446 = vmatpush1.msra.mxu0 %v328
    %447 = vmatprep.subr.mxu0 0.0
    %448 = vmatpush1.msra.mxu0 %v325
    %449 = vmatprep.subr.mxu0 0.0
    %450 = vmatpush1.msra.mxu0 %v322
    %451 = vmatprep.subr.mxu0 0.0
    %452 = vmatpush1.msra.mxu0 %v319
    %453 = vmatprep.subr.mxu0 0.0
    %454 = vmatpush1.msra.mxu0 %v316
    %455 = vmatprep.subr.mxu0 0.0
    %456 = vmatpush1.msra.mxu0 %v313
    %457 = vmatprep.subr.mxu0 0.0
    %458 = vmatpush1.msra.mxu0 %v310
    %459 = vmatprep.subr.mxu0 0.0
    %460 = vmatpush2.msra.mxu0 0.0
    %461 = vmatprep.subr.mxu0 0.0
    %462 = vmatpush2.msra.mxu0 0.0
    %463 = vmatprep.subr.mxu0 0.0
    %464 = vmatpush2.msra.mxu0 0.0
    %465 = vmatprep.subr.mxu0 0.0
    %466 = vmatpush2.msra.mxu0 0.0
    %467 = vmatprep.subr.mxu0 0.0
    %468 = vmatpush2.msra.mxu0 0.0
    %469 = vmatprep.subr.mxu0 0.0
    %470 = vmatpush2.msra.mxu0 0.0
    %471 = vmatprep.subr.mxu0 0.0
    %472 = vmatpush2.msra.mxu0 0.0
    %473 = vmatprep.subr.mxu0 0.0
    %474 = vmatpush2.msra.mxu0 0.0
    %475 = vmatprep.subr.mxu0 0.0
    %476 = vmatpush2.msra.mxu0 0.0
    %477 = vmatprep.subr.mxu0 0.0
    %478 = vmatpush2.msra.mxu0 0.0
    %479 = vmatprep.subr.mxu0 0.0
    %480 = vmatpush2.msra.mxu0 0.0
    %481 = vmatprep.subr.mxu0 0.0
    %482 = vmatpush2.msra.mxu0 0.0
    %483 = vmatprep.subr.mxu0 0.0
    %484 = vmatpush2.msra.mxu0 0.0
    %485 = vmatprep.subr.mxu0 0.0
    %486 = vmatpush2.msra.mxu0 0.0
    %487 = vmatprep.subr.mxu0 0.0
    %488 = vmatpush2.msra.mxu0 0.0
    %489 = vmatprep.subr.mxu0 0.0
    %490 = vmatpush2.msra.mxu0 0.0
    %491 = vmatprep.mubr.f32.mxu0 0.0
    %492 = vmatmul.mubr.f32.gmra.mxu0 %v301
    %v493 = vpop.f32.mrf.mxu0
    %v494 = vadd.f32 0.0, %v493
    %v495 = vpop.f32.mrf.mxu0
    %496 = vdwg.mxu0
    %v497 = vadd.f32 %v307, %v423
    %v498 = vxor.u32 %v497, 2147483648
    %v499 = vmul.f32 %v498, 1.442695
    %v500 = vpow.pop %v499
    %v501 = vadd.f32 %v500, 1.0
    %v502 = vrcp.pop %v501
    %v503 = vmul.f32 1.0, %v502
    %v505 = vrot.slane %v307, 1
    %v507 = vadd.f32 %v505, %v425
    %v508 = vxor.u32 %v507, 2147483648
    %v509 = vmul.f32 %v508, 1.442695
    %v510 = vpow.pop %v509
    %v511 = vadd.f32 %v510, 1.0
    %v512 = vrcp.pop %v511
    %v513 = vmul.f32 1.0, %v512
    %v514 = vld [vmem:[%s3] sm:$0x1]
    %v515 = vadd.f32 %v494, %v514
    %v516 = vmul.f32 %v503, %v515
    %v517 = vrot.slane %v307, 2
    %v519 = vadd.f32 %v517, %v516
    %v520 = vtanh.pop %v519
    %v521 = vsub.f32 %v301, %v520
    %v522 = vmul.f32 %v513, %v521
    %v523 = vadd.f32 %v520, %v522
    %524 = vst [vmem:[#allocation2 + $0x1] sm:$0x1] %v523
    %s525 = sadd.s32 %s81, 2
    %s526 = sld [smem:[#allocation4 + %s525]]
    %s527 = smul.u32 %s526, 3
    %s528 = scalar_lea.vmem [#allocation5], %s527
    %v529 = vld [vmem:[%s528] sm:$0x7]
    %v530 = vld [vmem:[#allocation8] sm:$0xff]
    %v531 = vld [vmem:[#allocation8 + $0x8] sm:$0xff]
    %v532 = vld [vmem:[#allocation8 + $0x10] sm:$0xff]
    %v533 = vld [vmem:[#allocation8 + $0x18] sm:$0xff]
    %v534 = vld [vmem:[#allocation8 + $0x20] sm:$0xff]
    %v535 = vld [vmem:[#allocation8 + $0x28] sm:$0xff]
    %v536 = vld [vmem:[#allocation8 + $0x30] sm:$0xff]
    %v537 = vld [vmem:[#allocation8 + $0x38] sm:$0xff]
    %v538 = vld [vmem:[#allocation8 + $0x40] sm:$0xff]
    %v539 = vld [vmem:[#allocation8 + $0x48] sm:$0xff]
    %v540 = vld [vmem:[#allocation8 + $0x50] sm:$0xff]
    %v541 = vld [vmem:[#allocation8 + $0x58] sm:$0xff]
    %v542 = vld [vmem:[#allocation8 + $0x60] sm:$0xff]
    %v543 = vld [vmem:[#allocation8 + $0x68] sm:$0xff]
    %v544 = vld [vmem:[#allocation8 + $0x70] sm:$0xff]
    %v545 = vld [vmem:[#allocation8 + $0x78] sm:$0xff]
    %v546 = vld [vmem:[#allocation8 + $0x80] sm:$0xff]
    %v547 = vld [vmem:[#allocation8 + $0x88] sm:$0xff]
    %v548 = vld [vmem:[#allocation8 + $0x90] sm:$0xff]
    %v549 = vld [vmem:[#allocation8 + $0x98] sm:$0xff]
    %v550 = vld [vmem:[#allocation8 + $0xa0] sm:$0xff]
    %v551 = vld [vmem:[#allocation8 + $0xa8] sm:$0xff]
    %v552 = vld [vmem:[#allocation8 + $0xb0] sm:$0xff]
    %v553 = vld [vmem:[#allocation8 + $0xb8] sm:$0xff]
    %v554 = vld [vmem:[#allocation8 + $0xc0] sm:$0xff]
    %v555 = vld [vmem:[#allocation8 + $0xc8] sm:$0xff]
    %v556 = vld [vmem:[#allocation8 + $0xd0] sm:$0xff]
    %v557 = vld [vmem:[#allocation8 + $0xd8] sm:$0xff]
    %v558 = vld [vmem:[#allocation8 + $0xe0] sm:$0xff]
    %v559 = vld [vmem:[#allocation8 + $0xe8] sm:$0xff]
    %v560 = vld [vmem:[#allocation8 + $0xf0] sm:$0xff]
    %v561 = vld [vmem:[#allocation8 + $0xf8] sm:$0xff]
    %v562 = vld [vmem:[#allocation8 + $0x100] sm:$0xff]
    %v563 = vld [vmem:[#allocation8 + $0x108] sm:$0xff]
    %v564 = vld [vmem:[#allocation8 + $0x110] sm:$0xff]
    %v565 = vld [vmem:[#allocation8 + $0x118] sm:$0xff]
    %v566 = vld [vmem:[#allocation8 + $0x120] sm:$0xff]
    %v567 = vld [vmem:[#allocation8 + $0x128] sm:$0xff]
    %v568 = vld [vmem:[#allocation8 + $0x130] sm:$0xff]
    %v569 = vld [vmem:[#allocation8 + $0x138] sm:$0xff]
    %v570 = vld [vmem:[#allocation8 + $0x140] sm:$0xff]
    %v571 = vld [vmem:[#allocation8 + $0x148] sm:$0xff]
    %v572 = vld [vmem:[#allocation8 + $0x150] sm:$0xff]
    %v573 = vld [vmem:[#allocation8 + $0x158] sm:$0xff]
    %v574 = vld [vmem:[#allocation8 + $0x160] sm:$0xff]
    %v575 = vld [vmem:[#allocation8 + $0x168] sm:$0xff]
    %v576 = vld [vmem:[#allocation8 + $0x170] sm:$0xff]
    %v577 = vld [vmem:[#allocation8 + $0x178] sm:$0xff]
    %578 = vmatprep.subr.mxu0 %v576
    %579 = vmatpush1.msra.mxu0 %v575
    %580 = vmatprep.subr.mxu0 %v573
    %581 = vmatpush1.msra.mxu0 %v572
    %582 = vmatprep.subr.mxu0 %v570
    %583 = vmatpush1.msra.mxu0 %v569
    %584 = vmatprep.subr.mxu0 %v567
    %585 = vmatpush1.msra.mxu0 %v566
    %586 = vmatprep.subr.mxu0 %v564
    %587 = vmatpush1.msra.mxu0 %v563
    %588 = vmatprep.subr.mxu0 %v561
    %589 = vmatpush1.msra.mxu0 %v560
    %590 = vmatprep.subr.mxu0 %v558
    %591 = vmatpush1.msra.mxu0 %v557
    %592 = vmatprep.subr.mxu0 %v555
    %593 = vmatpush1.msra.mxu0 %v554
    %594 = vmatprep.subr.mxu0 %v552
    %595 = vmatpush1.msra.mxu0 %v551
    %596 = vmatprep.subr.mxu0 %v549
    %597 = vmatpush1.msra.mxu0 %v548
    %598 = vmatprep.subr.mxu0 %v546
    %599 = vmatpush1.msra.mxu0 %v545
    %600 = vmatprep.subr.mxu0 %v543
    %601 = vmatpush1.msra.mxu0 %v542
    %602 = vmatprep.subr.mxu0 %v540
    %603 = vmatpush1.msra.mxu0 %v539
    %604 = vmatprep.subr.mxu0 %v537
    %605 = vmatpush1.msra.mxu0 %v536
    %606 = vmatprep.subr.mxu0 %v534
    %607 = vmatpush1.msra.mxu0 %v533
    %608 = vmatprep.subr.mxu0 %v531
    %609 = vmatpush1.msra.mxu0 %v530
    %610 = vmatprep.subr.mxu0 0.0
    %611 = vmatpush2.msra.mxu0 0.0
    %612 = vmatprep.subr.mxu0 0.0
    %613 = vmatpush2.msra.mxu0 0.0
    %614 = vmatprep.subr.mxu0 0.0
    %615 = vmatpush2.msra.mxu0 0.0
    %616 = vmatprep.subr.mxu0 0.0
    %617 = vmatpush2.msra.mxu0 0.0
    %618 = vmatprep.subr.mxu0 0.0
    %619 = vmatpush2.msra.mxu0 0.0
    %620 = vmatprep.subr.mxu0 0.0
    %621 = vmatpush2.msra.mxu0 0.0
    %622 = vmatprep.subr.mxu0 0.0
    %623 = vmatpush2.msra.mxu0 0.0
    %624 = vmatprep.subr.mxu0 0.0
    %625 = vmatpush2.msra.mxu0 0.0
    %626 = vmatprep.subr.mxu0 0.0
    %627 = vmatpush2.msra.mxu0 0.0
    %628 = vmatprep.subr.mxu0 0.0
    %629 = vmatpush2.msra.mxu0 0.0
    %630 = vmatprep.subr.mxu0 0.0
    %631 = vmatpush2.msra.mxu0 0.0
    %632 = vmatprep.subr.mxu0 0.0
    %633 = vmatpush2.msra.mxu0 0.0
    %634 = vmatprep.subr.mxu0 0.0
    %635 = vmatpush2.msra.mxu0 0.0
    %636 = vmatprep.subr.mxu0 0.0
    %637 = vmatpush2.msra.mxu0 0.0
    %638 = vmatprep.subr.mxu0 0.0
    %639 = vmatpush2.msra.mxu0 0.0
    %640 = vmatprep.subr.mxu0 0.0
    %641 = vmatpush2.msra.mxu0 0.0
    %642 = vmatprep.mubr.f32.mxu0 0.0
    %643 = vmatmul.mubr.f32.gmra.mxu0 %v523
    %v644 = vpop.f32.mrf.mxu0
    %v645 = vadd.f32 0.0, %v644
    %v646 = vpop.f32.mrf.mxu0
    %v647 = vadd.f32 0.0, %v646
    %648 = vdwg.mxu0
    %649 = vmatprep.subr.mxu0 0.0
    %650 = vmatpush1.msra.mxu0 %v577
    %651 = vmatprep.subr.mxu0 0.0
    %652 = vmatpush1.msra.mxu0 %v574
    %653 = vmatprep.subr.mxu0 0.0
    %654 = vmatpush1.msra.mxu0 %v571
    %655 = vmatprep.subr.mxu0 0.0
    %656 = vmatpush1.msra.mxu0 %v568
    %657 = vmatprep.subr.mxu0 0.0
    %658 = vmatpush1.msra.mxu0 %v565
    %659 = vmatprep.subr.mxu0 0.0
    %660 = vmatpush1.msra.mxu0 %v562
    %661 = vmatprep.subr.mxu0 0.0
    %662 = vmatpush1.msra.mxu0 %v559
    %663 = vmatprep.subr.mxu0 0.0
    %664 = vmatpush1.msra.mxu0 %v556
    %665 = vmatprep.subr.mxu0 0.0
    %666 = vmatpush1.msra.mxu0 %v553
    %667 = vmatprep.subr.mxu0 0.0
    %668 = vmatpush1.msra.mxu0 %v550
    %669 = vmatprep.subr.mxu0 0.0
    %670 = vmatpush1.msra.mxu0 %v547
    %671 = vmatprep.subr.mxu0 0.0
    %672 = vmatpush1.msra.mxu0 %v544
    %673 = vmatprep.subr.mxu0 0.0
    %674 = vmatpush1.msra.mxu0 %v541
    %675 = vmatprep.subr.mxu0 0.0
    %676 = vmatpush1.msra.mxu0 %v538
    %677 = vmatprep.subr.mxu0 0.0
    %678 = vmatpush1.msra.mxu0 %v535
    %679 = vmatprep.subr.mxu0 0.0
    %680 = vmatpush1.msra.mxu0 %v532
    %681 = vmatprep.subr.mxu0 0.0
    %682 = vmatpush2.msra.mxu0 0.0
    %683 = vmatprep.subr.mxu0 0.0
    %684 = vmatpush2.msra.mxu0 0.0
    %685 = vmatprep.subr.mxu0 0.0
    %686 = vmatpush2.msra.mxu0 0.0
    %687 = vmatprep.subr.mxu0 0.0
    %688 = vmatpush2.msra.mxu0 0.0
    %689 = vmatprep.subr.mxu0 0.0
    %690 = vmatpush2.msra.mxu0 0.0
    %691 = vmatprep.subr.mxu0 0.0
    %692 = vmatpush2.msra.mxu0 0.0
    %693 = vmatprep.subr.mxu0 0.0
    %694 = vmatpush2.msra.mxu0 0.0
    %695 = vmatprep.subr.mxu0 0.0
    %696 = vmatpush2.msra.mxu0 0.0
    %697 = vmatprep.subr.mxu0 0.0
    %698 = vmatpush2.msra.mxu0 0.0
    %699 = vmatprep.subr.mxu0 0.0
    %700 = vmatpush2.msra.mxu0 0.0
    %701 = vmatprep.subr.mxu0 0.0
    %702 = vmatpush2.msra.mxu0 0.0
    %703 = vmatprep.subr.mxu0 0.0
    %704 = vmatpush2.msra.mxu0 0.0
    %705 = vmatprep.subr.mxu0 0.0
    %706 = vmatpush2.msra.mxu0 0.0
    %707 = vmatprep.subr.mxu0 0.0
    %708 = vmatpush2.msra.mxu0 0.0
    %709 = vmatprep.subr.mxu0 0.0
    %710 = vmatpush2.msra.mxu0 0.0
    %711 = vmatprep.subr.mxu0 0.0
    %712 = vmatpush2.msra.mxu0 0.0
    %713 = vmatprep.mubr.f32.mxu0 0.0
    %714 = vmatmul.mubr.f32.gmra.mxu0 %v523
    %v715 = vpop.f32.mrf.mxu0
    %v716 = vadd.f32 0.0, %v715
    %v717 = vpop.f32.mrf.mxu0
    %718 = vdwg.mxu0
    %v719 = vadd.f32 %v529, %v645
    %v720 = vxor.u32 %v719, 2147483648
    %v721 = vmul.f32 %v720, 1.442695
    %v722 = vpow.pop %v721
    %v723 = vadd.f32 %v722, 1.0
    %v724 = vrcp.pop %v723
    %v725 = vmul.f32 1.0, %v724
    %v727 = vrot.slane %v529, 1
    %v729 = vadd.f32 %v727, %v647
    %v730 = vxor.u32 %v729, 2147483648
    %v731 = vmul.f32 %v730, 1.442695
    %v732 = vpow.pop %v731
    %v733 = vadd.f32 %v732, 1.0
    %v734 = vrcp.pop %v733
    %v735 = vmul.f32 1.0, %v734
    %v736 = vld [vmem:[%s3] sm:$0x1]
    %v737 = vadd.f32 %v716, %v736
    %v738 = vmul.f32 %v725, %v737
    %v739 = vrot.slane %v529, 2
    %v741 = vadd.f32 %v739, %v738
    %v742 = vtanh.pop %v741
    %v743 = vsub.f32 %v523, %v742
    %v744 = vmul.f32 %v735, %v743
    %v745 = vadd.f32 %v742, %v744
    %746 = vst [vmem:[#allocation2 + $0x2] sm:$0x1] %v745
    %s747 = sadd.s32 %s81, 3
    %s748 = sld [smem:[#allocation4 + %s747]]
    %s749 = smul.u32 %s748, 3
    %s750 = scalar_lea.vmem [#allocation5], %s749
    %v751 = vld [vmem:[%s750] sm:$0x7]
    %v752 = vld [vmem:[#allocation8] sm:$0xff]
    %v753 = vld [vmem:[#allocation8 + $0x8] sm:$0xff]
    %v754 = vld [vmem:[#allocation8 + $0x10] sm:$0xff]
    %v755 = vld [vmem:[#allocation8 + $0x18] sm:$0xff]
    %v756 = vld [vmem:[#allocation8 + $0x20] sm:$0xff]
    %v757 = vld [vmem:[#allocation8 + $0x28] sm:$0xff]
    %v758 = vld [vmem:[#allocation8 + $0x30] sm:$0xff]
    %v759 = vld [vmem:[#allocation8 + $0x38] sm:$0xff]
    %v760 = vld [vmem:[#allocation8 + $0x40] sm:$0xff]
    %v761 = vld [vmem:[#allocation8 + $0x48] sm:$0xff]
    %v762 = vld [vmem:[#allocation8 + $0x50] sm:$0xff]
    %v763 = vld [vmem:[#allocation8 + $0x58] sm:$0xff]
    %v764 = vld [vmem:[#allocation8 + $0x60] sm:$0xff]
    %v765 = vld [vmem:[#allocation8 + $0x68] sm:$0xff]
    %v766 = vld [vmem:[#allocation8 + $0x70] sm:$0xff]
    %v767 = vld [vmem:[#allocation8 + $0x78] sm:$0xff]
    %v768 = vld [vmem:[#allocation8 + $0x80] sm:$0xff]
    %v769 = vld [vmem:[#allocation8 + $0x88] sm:$0xff]
    %v770 = vld [vmem:[#allocation8 + $0x90] sm:$0xff]
    %v771 = vld [vmem:[#allocation8 + $0x98] sm:$0xff]
    %v772 = vld [vmem:[#allocation8 + $0xa0] sm:$0xff]
    %v773 = vld [vmem:[#allocation8 + $0xa8] sm:$0xff]
    %v774 = vld [vmem:[#allocation8 + $0xb0] sm:$0xff]
    %v775 = vld [vmem:[#allocation8 + $0xb8] sm:$0xff]
    %v776 = vld [vmem:[#allocation8 + $0xc0] sm:$0xff]
    %v777 = vld [vmem:[#allocation8 + $0xc8] sm:$0xff]
    %v778 = vld [vmem:[#allocation8 + $0xd0] sm:$0xff]
    %v779 = vld [vmem:[#allocation8 + $0xd8] sm:$0xff]
    %v780 = vld [vmem:[#allocation8 + $0xe0] sm:$0xff]
    %v781 = vld [vmem:[#allocation8 + $0xe8] sm:$0xff]
    %v782 = vld [vmem:[#allocation8 + $0xf0] sm:$0xff]
    %v783 = vld [vmem:[#allocation8 + $0xf8] sm:$0xff]
    %v784 = vld [vmem:[#allocation8 + $0x100] sm:$0xff]
    %v785 = vld [vmem:[#allocation8 + $0x108] sm:$0xff]
    %v786 = vld [vmem:[#allocation8 + $0x110] sm:$0xff]
    %v787 = vld [vmem:[#allocation8 + $0x118] sm:$0xff]
    %v788 = vld [vmem:[#allocation8 + $0x120] sm:$0xff]
    %v789 = vld [vmem:[#allocation8 + $0x128] sm:$0xff]
    %v790 = vld [vmem:[#allocation8 + $0x130] sm:$0xff]
    %v791 = vld [vmem:[#allocation8 + $0x138] sm:$0xff]
    %v792 = vld [vmem:[#allocation8 + $0x140] sm:$0xff]
    %v793 = vld [vmem:[#allocation8 + $0x148] sm:$0xff]
    %v794 = vld [vmem:[#allocation8 + $0x150] sm:$0xff]
    %v795 = vld [vmem:[#allocation8 + $0x158] sm:$0xff]
    %v796 = vld [vmem:[#allocation8 + $0x160] sm:$0xff]
    %v797 = vld [vmem:[#allocation8 + $0x168] sm:$0xff]
    %v798 = vld [vmem:[#allocation8 + $0x170] sm:$0xff]
    %v799 = vld [vmem:[#allocation8 + $0x178] sm:$0xff]
    %800 = vmatprep.subr.mxu0 %v798
    %801 = vmatpush1.msra.mxu0 %v797
    %802 = vmatprep.subr.mxu0 %v795
    %803 = vmatpush1.msra.mxu0 %v794
    %804 = vmatprep.subr.mxu0 %v792
    %805 = vmatpush1.msra.mxu0 %v791
    %806 = vmatprep.subr.mxu0 %v789
    %807 = vmatpush1.msra.mxu0 %v788
    %808 = vmatprep.subr.mxu0 %v786
    %809 = vmatpush1.msra.mxu0 %v785
    %810 = vmatprep.subr.mxu0 %v783
    %811 = vmatpush1.msra.mxu0 %v782
    %812 = vmatprep.subr.mxu0 %v780
    %813 = vmatpush1.msra.mxu0 %v779
    %814 = vmatprep.subr.mxu0 %v777
    %815 = vmatpush1.msra.mxu0 %v776
    %816 = vmatprep.subr.mxu0 %v774
    %817 = vmatpush1.msra.mxu0 %v773
    %818 = vmatprep.subr.mxu0 %v771
    %819 = vmatpush1.msra.mxu0 %v770
    %820 = vmatprep.subr.mxu0 %v768
    %821 = vmatpush1.msra.mxu0 %v767
    %822 = vmatprep.subr.mxu0 %v765
    %823 = vmatpush1.msra.mxu0 %v764
    %824 = vmatprep.subr.mxu0 %v762
    %825 = vmatpush1.msra.mxu0 %v761
    %826 = vmatprep.subr.mxu0 %v759
    %827 = vmatpush1.msra.mxu0 %v758
    %828 = vmatprep.subr.mxu0 %v756
    %829 = vmatpush1.msra.mxu0 %v755
    %830 = vmatprep.subr.mxu0 %v753
    %831 = vmatpush1.msra.mxu0 %v752
    %832 = vmatprep.subr.mxu0 0.0
    %833 = vmatpush2.msra.mxu0 0.0
    %834 = vmatprep.subr.mxu0 0.0
    %835 = vmatpush2.msra.mxu0 0.0
    %836 = vmatprep.subr.mxu0 0.0
    %837 = vmatpush2.msra.mxu0 0.0
    %838 = vmatprep.subr.mxu0 0.0
    %839 = vmatpush2.msra.mxu0 0.0
    %840 = vmatprep.subr.mxu0 0.0
    %841 = vmatpush2.msra.mxu0 0.0
    %842 = vmatprep.subr.mxu0 0.0
    %843 = vmatpush2.msra.mxu0 0.0
    %844 = vmatprep.subr.mxu0 0.0
    %845 = vmatpush2.msra.mxu0 0.0
    %846 = vmatprep.subr.mxu0 0.0
    %847 = vmatpush2.msra.mxu0 0.0
    %848 = vmatprep.subr.mxu0 0.0
    %849 = vmatpush2.msra.mxu0 0.0
    %850 = vmatprep.subr.mxu0 0.0
    %851 = vmatpush2.msra.mxu0 0.0
    %852 = vmatprep.subr.mxu0 0.0
    %853 = vmatpush2.msra.mxu0 0.0
    %854 = vmatprep.subr.mxu0 0.0
    %855 = vmatpush2.msra.mxu0 0.0
    %856 = vmatprep.subr.mxu0 0.0
    %857 = vmatpush2.msra.mxu0 0.0
    %858 = vmatprep.subr.mxu0 0.0
    %859 = vmatpush2.msra.mxu0 0.0
    %860 = vmatprep.subr.mxu0 0.0
    %861 = vmatpush2.msra.mxu0 0.0
    %862 = vmatprep.subr.mxu0 0.0
    %863 = vmatpush2.msra.mxu0 0.0
    %864 = vmatprep.mubr.f32.mxu0 0.0
    %865 = vmatmul.mubr.f32.gmra.mxu0 %v745
    %v866 = vpop.f32.mrf.mxu0
    %v867 = vadd.f32 0.0, %v866
    %v868 = vpop.f32.mrf.mxu0
    %v869 = vadd.f32 0.0, %v868
    %870 = vdwg.mxu0
    %871 = vmatprep.subr.mxu0 0.0
    %872 = vmatpush1.msra.mxu0 %v799
    %873 = vmatprep.subr.mxu0 0.0
    %874 = vmatpush1.msra.mxu0 %v796
    %875 = vmatprep.subr.mxu0 0.0
    %876 = vmatpush1.msra.mxu0 %v793
    %877 = vmatprep.subr.mxu0 0.0
    %878 = vmatpush1.msra.mxu0 %v790
    %879 = vmatprep.subr.mxu0 0.0
    %880 = vmatpush1.msra.mxu0 %v787
    %881 = vmatprep.subr.mxu0 0.0
    %882 = vmatpush1.msra.mxu0 %v784
    %883 = vmatprep.subr.mxu0 0.0
    %884 = vmatpush1.msra.mxu0 %v781
    %885 = vmatprep.subr.mxu0 0.0
    %886 = vmatpush1.msra.mxu0 %v778
    %887 = vmatprep.subr.mxu0 0.0
    %888 = vmatpush1.msra.mxu0 %v775
    %889 = vmatprep.subr.mxu0 0.0
    %890 = vmatpush1.msra.mxu0 %v772
    %891 = vmatprep.subr.mxu0 0.0
    %892 = vmatpush1.msra.mxu0 %v769
    %893 = vmatprep.subr.mxu0 0.0
    %894 = vmatpush1.msra.mxu0 %v766
    %895 = vmatprep.subr.mxu0 0.0
    %896 = vmatpush1.msra.mxu0 %v763
    %897 = vmatprep.subr.mxu0 0.0
    %898 = vmatpush1.msra.mxu0 %v760
    %899 = vmatprep.subr.mxu0 0.0
    %900 = vmatpush1.msra.mxu0 %v757
    %901 = vmatprep.subr.mxu0 0.0
    %902 = vmatpush1.msra.mxu0 %v754
    %903 = vmatprep.subr.mxu0 0.0
    %904 = vmatpush2.msra.mxu0 0.0
    %905 = vmatprep.subr.mxu0 0.0
    %906 = vmatpush2.msra.mxu0 0.0
    %907 = vmatprep.subr.mxu0 0.0
    %908 = vmatpush2.msra.mxu0 0.0
    %909 = vmatprep.subr.mxu0 0.0
    %910 = vmatpush2.msra.mxu0 0.0
    %911 = vmatprep.subr.mxu0 0.0
    %912 = vmatpush2.msra.mxu0 0.0
    %913 = vmatprep.subr.mxu0 0.0
    %914 = vmatpush2.msra.mxu0 0.0
    %915 = vmatprep.subr.mxu0 0.0
    %916 = vmatpush2.msra.mxu0 0.0
    %917 = vmatprep.subr.mxu0 0.0
    %918 = vmatpush2.msra.mxu0 0.0
    %919 = vmatprep.subr.mxu0 0.0
    %920 = vmatpush2.msra.mxu0 0.0
    %921 = vmatprep.subr.mxu0 0.0
    %922 = vmatpush2.msra.mxu0 0.0
    %923 = vmatprep.subr.mxu0 0.0
    %924 = vmatpush2.msra.mxu0 0.0
    %925 = vmatprep.subr.mxu0 0.0
    %926 = vmatpush2.msra.mxu0 0.0
    %927 = vmatprep.subr.mxu0 0.0
    %928 = vmatpush2.msra.mxu0 0.0
    %929 = vmatprep.subr.mxu0 0.0
    %930 = vmatpush2.msra.mxu0 0.0
    %931 = vmatprep.subr.mxu0 0.0
    %932 = vmatpush2.msra.mxu0 0.0
    %933 = vmatprep.subr.mxu0 0.0
    %934 = vmatpush2.msra.mxu0 0.0
    %935 = vmatprep.mubr.f32.mxu0 0.0
    %936 = vmatmul.mubr.f32.gmra.mxu0 %v745
    %v937 = vpop.f32.mrf.mxu0
    %v938 = vadd.f32 0.0, %v937
    %v939 = vpop.f32.mrf.mxu0
    %940 = vdwg.mxu0
    %v941 = vadd.f32 %v751, %v867
    %v942 = vxor.u32 %v941, 2147483648
    %v943 = vmul.f32 %v942, 1.442695
    %v944 = vpow.pop %v943
    %v945 = vadd.f32 %v944, 1.0
    %v946 = vrcp.pop %v945
    %v947 = vmul.f32 1.0, %v946
    %v949 = vrot.slane %v751, 1
    %v951 = vadd.f32 %v949, %v869
    %v952 = vxor.u32 %v951, 2147483648
    %v953 = vmul.f32 %v952, 1.442695
    %v954 = vpow.pop %v953
    %v955 = vadd.f32 %v954, 1.0
    %v956 = vrcp.pop %v955
    %v957 = vmul.f32 1.0, %v956
    %v958 = vld [vmem:[%s3] sm:$0x1]
    %v959 = vadd.f32 %v938, %v958
    %v960 = vmul.f32 %v947, %v959
    %v961 = vrot.slane %v751, 2
    %v963 = vadd.f32 %v961, %v960
    %v964 = vtanh.pop %v963
    %v965 = vsub.f32 %v745, %v964
    %v966 = vmul.f32 %v957, %v965
    %v967 = vadd.f32 %v964, %v966
    %968 = vst [vmem:[#allocation2 + $0x3] sm:$0x1] %v967
    %s969 = sadd.s32 %s81, 4
    %s970 = sld [smem:[#allocation4 + %s969]]
    %s971 = smul.u32 %s970, 3
    %s972 = scalar_lea.vmem [#allocation5], %s971
    %v973 = vld [vmem:[%s972] sm:$0x7]
    %v974 = vld [vmem:[#allocation8] sm:$0xff]
    %v975 = vld [vmem:[#allocation8 + $0x8] sm:$0xff]
    %v976 = vld [vmem:[#allocation8 + $0x10] sm:$0xff]
    %v977 = vld [vmem:[#allocation8 + $0x18] sm:$0xff]
    %v978 = vld [vmem:[#allocation8 + $0x20] sm:$0xff]
    %v979 = vld [vmem:[#allocation8 + $0x28] sm:$0xff]
    %v980 = vld [vmem:[#allocation8 + $0x30] sm:$0xff]
    %v981 = vld [vmem:[#allocation8 + $0x38] sm:$0xff]
    %v982 = vld [vmem:[#allocation8 + $0x40] sm:$0xff]
    %v983 = vld [vmem:[#allocation8 + $0x48] sm:$0xff]
    %v984 = vld [vmem:[#allocation8 + $0x50] sm:$0xff]
    %v985 = vld [vmem:[#allocation8 + $0x58] sm:$0xff]
    %v986 = vld [vmem:[#allocation8 + $0x60] sm:$0xff]
    %v987 = vld [vmem:[#allocation8 + $0x68] sm:$0xff]
    %v988 = vld [vmem:[#allocation8 + $0x70] sm:$0xff]
    %v989 = vld [vmem:[#allocation8 + $0x78] sm:$0xff]
    %v990 = vld [vmem:[#allocation8 + $0x80] sm:$0xff]
    %v991 = vld [vmem:[#allocation8 + $0x88] sm:$0xff]
    %v992 = vld [vmem:[#allocation8 + $0x90] sm:$0xff]
    %v993 = vld [vmem:[#allocation8 + $0x98] sm:$0xff]
    %v994 = vld [vmem:[#allocation8 + $0xa0] sm:$0xff]
    %v995 = vld [vmem:[#allocation8 + $0xa8] sm:$0xff]
    %v996 = vld [vmem:[#allocation8 + $0xb0] sm:$0xff]
    %v997 = vld [vmem:[#allocation8 + $0xb8] sm:$0xff]
    %v998 = vld [vmem:[#allocation8 + $0xc0] sm:$0xff]
    %v999 = vld [vmem:[#allocation8 + $0xc8] sm:$0xff]
    %v1000 = vld [vmem:[#allocation8 + $0xd0] sm:$0xff]
    %v1001 = vld [vmem:[#allocation8 + $0xd8] sm:$0xff]
    %v1002 = vld [vmem:[#allocation8 + $0xe0] sm:$0xff]
    %v1003 = vld [vmem:[#allocation8 + $0xe8] sm:$0xff]
    %v1004 = vld [vmem:[#allocation8 + $0xf0] sm:$0xff]
    %v1005 = vld [vmem:[#allocation8 + $0xf8] sm:$0xff]
    %v1006 = vld [vmem:[#allocation8 + $0x100] sm:$0xff]
    %v1007 = vld [vmem:[#allocation8 + $0x108] sm:$0xff]
    %v1008 = vld [vmem:[#allocation8 + $0x110] sm:$0xff]
    %v1009 = vld [vmem:[#allocation8 + $0x118] sm:$0xff]
    %v1010 = vld [vmem:[#allocation8 + $0x120] sm:$0xff]
    %v1011 = vld [vmem:[#allocation8 + $0x128] sm:$0xff]
    %v1012 = vld [vmem:[#allocation8 + $0x130] sm:$0xff]
    %v1013 = vld [vmem:[#allocation8 + $0x138] sm:$0xff]
    %v1014 = vld [vmem:[#allocation8 + $0x140] sm:$0xff]
    %v1015 = vld [vmem:[#allocation8 + $0x148] sm:$0xff]
    %v1016 = vld [vmem:[#allocation8 + $0x150] sm:$0xff]
    %v1017 = vld [vmem:[#allocation8 + $0x158] sm:$0xff]
    %v1018 = vld [vmem:[#allocation8 + $0x160] sm:$0xff]
    %v1019 = vld [vmem:[#allocation8 + $0x168] sm:$0xff]
    %v1020 = vld [vmem:[#allocation8 + $0x170] sm:$0xff]
    %v1021 = vld [vmem:[#allocation8 + $0x178] sm:$0xff]
    %1022 = vmatprep.subr.mxu0 %v1020
    %1023 = vmatpush1.msra.mxu0 %v1019
    %1024 = vmatprep.subr.mxu0 %v1017
    %1025 = vmatpush1.msra.mxu0 %v1016
    %1026 = vmatprep.subr.mxu0 %v1014
    %1027 = vmatpush1.msra.mxu0 %v1013
    %1028 = vmatprep.subr.mxu0 %v1011
    %1029 = vmatpush1.msra.mxu0 %v1010
    %1030 = vmatprep.subr.mxu0 %v1008
    %1031 = vmatpush1.msra.mxu0 %v1007
    %1032 = vmatprep.subr.mxu0 %v1005
    %1033 = vmatpush1.msra.mxu0 %v1004
    %1034 = vmatprep.subr.mxu0 %v1002
    %1035 = vmatpush1.msra.mxu0 %v1001
    %1036 = vmatprep.subr.mxu0 %v999
    %1037 = vmatpush1.msra.mxu0 %v998
    %1038 = vmatprep.subr.mxu0 %v996
    %1039 = vmatpush1.msra.mxu0 %v995
    %1040 = vmatprep.subr.mxu0 %v993
    %1041 = vmatpush1.msra.mxu0 %v992
    %1042 = vmatprep.subr.mxu0 %v990
    %1043 = vmatpush1.msra.mxu0 %v989
    %1044 = vmatprep.subr.mxu0 %v987
    %1045 = vmatpush1.msra.mxu0 %v986
    %1046 = vmatprep.subr.mxu0 %v984
    %1047 = vmatpush1.msra.mxu0 %v983
    %1048 = vmatprep.subr.mxu0 %v981
    %1049 = vmatpush1.msra.mxu0 %v980
    %1050 = vmatprep.subr.mxu0 %v978
    %1051 = vmatpush1.msra.mxu0 %v977
    %1052 = vmatprep.subr.mxu0 %v975
    %1053 = vmatpush1.msra.mxu0 %v974
    %1054 = vmatprep.subr.mxu0 0.0
    %1055 = vmatpush2.msra.mxu0 0.0
    %1056 = vmatprep.subr.mxu0 0.0
    %1057 = vmatpush2.msra.mxu0 0.0
    %1058 = vmatprep.subr.mxu0 0.0
    %1059 = vmatpush2.msra.mxu0 0.0
    %1060 = vmatprep.subr.mxu0 0.0
    %1061 = vmatpush2.msra.mxu0 0.0
    %1062 = vmatprep.subr.mxu0 0.0
    %1063 = vmatpush2.msra.mxu0 0.0
    %1064 = vmatprep.subr.mxu0 0.0
    %1065 = vmatpush2.msra.mxu0 0.0
    %1066 = vmatprep.subr.mxu0 0.0
    %1067 = vmatpush2.msra.mxu0 0.0
    %1068 = vmatprep.subr.mxu0 0.0
    %1069 = vmatpush2.msra.mxu0 0.0
    %1070 = vmatprep.subr.mxu0 0.0
    %1071 = vmatpush2.msra.mxu0 0.0
    %1072 = vmatprep.subr.mxu0 0.0
    %1073 = vmatpush2.msra.mxu0 0.0
    %1074 = vmatprep.subr.mxu0 0.0
    %1075 = vmatpush2.msra.mxu0 0.0
    %1076 = vmatprep.subr.mxu0 0.0
    %1077 = vmatpush2.msra.mxu0 0.0
    %1078 = vmatprep.subr.mxu0 0.0
    %1079 = vmatpush2.msra.mxu0 0.0
    %1080 = vmatprep.subr.mxu0 0.0
    %1081 = vmatpush2.msra.mxu0 0.0
    %1082 = vmatprep.subr.mxu0 0.0
    %1083 = vmatpush2.msra.mxu0 0.0
    %1084 = vmatprep.subr.mxu0 0.0
    %1085 = vmatpush2.msra.mxu0 0.0
    %1086 = vmatprep.mubr.f32.mxu0 0.0
    %1087 = vmatmul.mubr.f32.gmra.mxu0 %v967
    %v1088 = vpop.f32.mrf.mxu0
    %v1089 = vadd.f32 0.0, %v1088
    %v1090 = vpop.f32.mrf.mxu0
    %v1091 = vadd.f32 0.0, %v1090
    %1092 = vdwg.mxu0
    %1093 = vmatprep.subr.mxu0 0.0
    %1094 = vmatpush1.msra.mxu0 %v1021
    %1095 = vmatprep.subr.mxu0 0.0
    %1096 = vmatpush1.msra.mxu0 %v1018
    %1097 = vmatprep.subr.mxu0 0.0
    %1098 = vmatpush1.msra.mxu0 %v1015
    %1099 = vmatprep.subr.mxu0 0.0
    %1100 = vmatpush1.msra.mxu0 %v1012
    %1101 = vmatprep.subr.mxu0 0.0
    %1102 = vmatpush1.msra.mxu0 %v1009
    %1103 = vmatprep.subr.mxu0 0.0
    %1104 = vmatpush1.msra.mxu0 %v1006
    %1105 = vmatprep.subr.mxu0 0.0
    %1106 = vmatpush1.msra.mxu0 %v1003
    %1107 = vmatprep.subr.mxu0 0.0
    %1108 = vmatpush1.msra.mxu0 %v1000
    %1109 = vmatprep.subr.mxu0 0.0
    %1110 = vmatpush1.msra.mxu0 %v997
    %1111 = vmatprep.subr.mxu0 0.0
    %1112 = vmatpush1.msra.mxu0 %v994
    %1113 = vmatprep.subr.mxu0 0.0
    %1114 = vmatpush1.msra.mxu0 %v991
    %1115 = vmatprep.subr.mxu0 0.0
    %1116 = vmatpush1.msra.mxu0 %v988
    %1117 = vmatprep.subr.mxu0 0.0
    %1118 = vmatpush1.msra.mxu0 %v985
    %1119 = vmatprep.subr.mxu0 0.0
    %1120 = vmatpush1.msra.mxu0 %v982
    %1121 = vmatprep.subr.mxu0 0.0
    %1122 = vmatpush1.msra.mxu0 %v979
    %1123 = vmatprep.subr.mxu0 0.0
    %1124 = vmatpush1.msra.mxu0 %v976
    %1125 = vmatprep.subr.mxu0 0.0
    %1126 = vmatpush2.msra.mxu0 0.0
    %1127 = vmatprep.subr.mxu0 0.0
    %1128 = vmatpush2.msra.mxu0 0.0
    %1129 = vmatprep.subr.mxu0 0.0
    %1130 = vmatpush2.msra.mxu0 0.0
    %1131 = vmatprep.subr.mxu0 0.0
    %1132 = vmatpush2.msra.mxu0 0.0
    %1133 = vmatprep.subr.mxu0 0.0
    %1134 = vmatpush2.msra.mxu0 0.0
    %1135 = vmatprep.subr.mxu0 0.0
    %1136 = vmatpush2.msra.mxu0 0.0
    %1137 = vmatprep.subr.mxu0 0.0
    %1138 = vmatpush2.msra.mxu0 0.0
    %1139 = vmatprep.subr.mxu0 0.0
    %1140 = vmatpush2.msra.mxu0 0.0
    %1141 = vmatprep.subr.mxu0 0.0
    %1142 = vmatpush2.msra.mxu0 0.0
    %1143 = vmatprep.subr.mxu0 0.0
    %1144 = vmatpush2.msra.mxu0 0.0
    %1145 = vmatprep.subr.mxu0 0.0
    %1146 = vmatpush2.msra.mxu0 0.0
    %1147 = vmatprep.subr.mxu0 0.0
    %1148 = vmatpush2.msra.mxu0 0.0
    %1149 = vmatprep.subr.mxu0 0.0
    %1150 = vmatpush2.msra.mxu0 0.0
    %1151 = vmatprep.subr.mxu0 0.0
    %1152 = vmatpush2.msra.mxu0 0.0
    %1153 = vmatprep.subr.mxu0 0.0
    %1154 = vmatpush2.msra.mxu0 0.0
    %1155 = vmatprep.subr.mxu0 0.0
    %1156 = vmatpush2.msra.mxu0 0.0
    %1157 = vmatprep.mubr.f32.mxu0 0.0
    %1158 = vmatmul.mubr.f32.gmra.mxu0 %v967
    %v1159 = vpop.f32.mrf.mxu0
    %v1160 = vadd.f32 0.0, %v1159
    %v1161 = vpop.f32.mrf.mxu0
    %1162 = vdwg.mxu0
    %v1163 = vadd.f32 %v973, %v1089
    %v1164 = vxor.u32 %v1163, 2147483648
    %v1165 = vmul.f32 %v1164, 1.442695
    %v1166 = vpow.pop %v1165
    %v1167 = vadd.f32 %v1166, 1.0
    %v1168 = vrcp.pop %v1167
    %v1169 = vmul.f32 1.0, %v1168
    %v1171 = vrot.slane %v973, 1
    %v1173 = vadd.f32 %v1171, %v1091
    %v1174 = vxor.u32 %v1173, 2147483648
    %v1175 = vmul.f32 %v1174, 1.442695
    %v1176 = vpow.pop %v1175
    %v1177 = vadd.f32 %v1176, 1.0
    %v1178 = vrcp.pop %v1177
    %v1179 = vmul.f32 1.0, %v1178
    %v1180 = vld [vmem:[%s3] sm:$0x1]
    %v1181 = vadd.f32 %v1160, %v1180
    %v1182 = vmul.f32 %v1169, %v1181
    %v1183 = vrot.slane %v973, 2
    %v1185 = vadd.f32 %v1183, %v1182
    %v1186 = vtanh.pop %v1185
    %v1187 = vsub.f32 %v967, %v1186
    %v1188 = vmul.f32 %v1179, %v1187
    %v1189 = vadd.f32 %v1186, %v1188
    %1190 = vst [vmem:[#allocation2 + $0x4] sm:$0x1] %v1189
    %s1191 = sadd.s32 %s81, 5
    %s1192 = sld [smem:[#allocation4 + %s1191]]
    %s1193 = smul.u32 %s1192, 3
    %s1194 = scalar_lea.vmem [#allocation5], %s1193
    %v1195 = vld [vmem:[%s1194] sm:$0x7]
    %v1196 = vld [vmem:[#allocation8] sm:$0xff]
    %v1197 = vld [vmem:[#allocation8 + $0x8] sm:$0xff]
    %v1198 = vld [vmem:[#allocation8 + $0x10] sm:$0xff]
    %v1199 = vld [vmem:[#allocation8 + $0x18] sm:$0xff]
    %v1200 = vld [vmem:[#allocation8 + $0x20] sm:$0xff]
    %v1201 = vld [vmem:[#allocation8 + $0x28] sm:$0xff]
    %v1202 = vld [vmem:[#allocation8 + $0x30] sm:$0xff]
    %v1203 = vld [vmem:[#allocation8 + $0x38] sm:$0xff]
    %v1204 = vld [vmem:[#allocation8 + $0x40] sm:$0xff]
    %v1205 = vld [vmem:[#allocation8 + $0x48] sm:$0xff]
    %v1206 = vld [vmem:[#allocation8 + $0x50] sm:$0xff]
    %v1207 = vld [vmem:[#allocation8 + $0x58] sm:$0xff]
    %v1208 = vld [vmem:[#allocation8 + $0x60] sm:$0xff]
    %v1209 = vld [vmem:[#allocation8 + $0x68] sm:$0xff]
    %v1210 = vld [vmem:[#allocation8 + $0x70] sm:$0xff]
    %v1211 = vld [vmem:[#allocation8 + $0x78] sm:$0xff]
    %v1212 = vld [vmem:[#allocation8 + $0x80] sm:$0xff]
    %v1213 = vld [vmem:[#allocation8 + $0x88] sm:$0xff]
    %v1214 = vld [vmem:[#allocation8 + $0x90] sm:$0xff]
    %v1215 = vld [vmem:[#allocation8 + $0x98] sm:$0xff]
    %v1216 = vld [vmem:[#allocation8 + $0xa0] sm:$0xff]
    %v1217 = vld [vmem:[#allocation8 + $0xa8] sm:$0xff]
    %v1218 = vld [vmem:[#allocation8 + $0xb0] sm:$0xff]
    %v1219 = vld [vmem:[#allocation8 + $0xb8] sm:$0xff]
    %v1220 = vld [vmem:[#allocation8 + $0xc0] sm:$0xff]
    %v1221 = vld [vmem:[#allocation8 + $0xc8] sm:$0xff]
    %v1222 = vld [vmem:[#allocation8 + $0xd0] sm:$0xff]
    %v1223 = vld [vmem:[#allocation8 + $0xd8] sm:$0xff]
    %v1224 = vld [vmem:[#allocation8 + $0xe0] sm:$0xff]
    %v1225 = vld [vmem:[#allocation8 + $0xe8] sm:$0xff]
    %v1226 = vld [vmem:[#allocation8 + $0xf0] sm:$0xff]
    %v1227 = vld [vmem:[#allocation8 + $0xf8] sm:$0xff]
    %v1228 = vld [vmem:[#allocation8 + $0x100] sm:$0xff]
    %v1229 = vld [vmem:[#allocation8 + $0x108] sm:$0xff]
    %v1230 = vld [vmem:[#allocation8 + $0x110] sm:$0xff]
    %v1231 = vld [vmem:[#allocation8 + $0x118] sm:$0xff]
    %v1232 = vld [vmem:[#allocation8 + $0x120] sm:$0xff]
    %v1233 = vld [vmem:[#allocation8 + $0x128] sm:$0xff]
    %v1234 = vld [vmem:[#allocation8 + $0x130] sm:$0xff]
    %v1235 = vld [vmem:[#allocation8 + $0x138] sm:$0xff]
    %v1236 = vld [vmem:[#allocation8 + $0x140] sm:$0xff]
    %v1237 = vld [vmem:[#allocation8 + $0x148] sm:$0xff]
    %v1238 = vld [vmem:[#allocation8 + $0x150] sm:$0xff]
    %v1239 = vld [vmem:[#allocation8 + $0x158] sm:$0xff]
    %v1240 = vld [vmem:[#allocation8 + $0x160] sm:$0xff]
    %v1241 = vld [vmem:[#allocation8 + $0x168] sm:$0xff]
    %v1242 = vld [vmem:[#allocation8 + $0x170] sm:$0xff]
    %v1243 = vld [vmem:[#allocation8 + $0x178] sm:$0xff]
    %1244 = vmatprep.subr.mxu0 %v1242
    %1245 = vmatpush1.msra.mxu0 %v1241
    %1246 = vmatprep.subr.mxu0 %v1239
    %1247 = vmatpush1.msra.mxu0 %v1238
    %1248 = vmatprep.subr.mxu0 %v1236
    %1249 = vmatpush1.msra.mxu0 %v1235
    %1250 = vmatprep.subr.mxu0 %v1233
    %1251 = vmatpush1.msra.mxu0 %v1232
    %1252 = vmatprep.subr.mxu0 %v1230
    %1253 = vmatpush1.msra.mxu0 %v1229
    %1254 = vmatprep.subr.mxu0 %v1227
    %1255 = vmatpush1.msra.mxu0 %v1226
    %1256 = vmatprep.subr.mxu0 %v1224
    %1257 = vmatpush1.msra.mxu0 %v1223
    %1258 = vmatprep.subr.mxu0 %v1221
    %1259 = vmatpush1.msra.mxu0 %v1220
    %1260 = vmatprep.subr.mxu0 %v1218
    %1261 = vmatpush1.msra.mxu0 %v1217
    %1262 = vmatprep.subr.mxu0 %v1215
    %1263 = vmatpush1.msra.mxu0 %v1214
    %1264 = vmatprep.subr.mxu0 %v1212
    %1265 = vmatpush1.msra.mxu0 %v1211
    %1266 = vmatprep.subr.mxu0 %v1209
    %1267 = vmatpush1.msra.mxu0 %v1208
    %1268 = vmatprep.subr.mxu0 %v1206
    %1269 = vmatpush1.msra.mxu0 %v1205
    %1270 = vmatprep.subr.mxu0 %v1203
    %1271 = vmatpush1.msra.mxu0 %v1202
    %1272 = vmatprep.subr.mxu0 %v1200
    %1273 = vmatpush1.msra.mxu0 %v1199
    %1274 = vmatprep.subr.mxu0 %v1197
    %1275 = vmatpush1.msra.mxu0 %v1196
    %1276 = vmatprep.subr.mxu0 0.0
    %1277 = vmatpush2.msra.mxu0 0.0
    %1278 = vmatprep.subr.mxu0 0.0
    %1279 = vmatpush2.msra.mxu0 0.0
    %1280 = vmatprep.subr.mxu0 0.0
    %1281 = vmatpush2.msra.mxu0 0.0
    %1282 = vmatprep.subr.mxu0 0.0
    %1283 = vmatpush2.msra.mxu0 0.0
    %1284 = vmatprep.subr.mxu0 0.0
    %1285 = vmatpush2.msra.mxu0 0.0
    %1286 = vmatprep.subr.mxu0 0.0
    %1287 = vmatpush2.msra.mxu0 0.0
    %1288 = vmatprep.subr.mxu0 0.0
    %1289 = vmatpush2.msra.mxu0 0.0
    %1290 = vmatprep.subr.mxu0 0.0
    %1291 = vmatpush2.msra.mxu0 0.0
    %1292 = vmatprep.subr.mxu0 0.0
    %1293 = vmatpush2.msra.mxu0 0.0
    %1294 = vmatprep.subr.mxu0 0.0
    %1295 = vmatpush2.msra.mxu0 0.0
    %1296 = vmatprep.subr.mxu0 0.0
    %1297 = vmatpush2.msra.mxu0 0.0
    %1298 = vmatprep.subr.mxu0 0.0
    %1299 = vmatpush2.msra.mxu0 0.0
    %1300 = vmatprep.subr.mxu0 0.0
    %1301 = vmatpush2.msra.mxu0 0.0
    %1302 = vmatprep.subr.mxu0 0.0
    %1303 = vmatpush2.msra.mxu0 0.0
    %1304 = vmatprep.subr.mxu0 0.0
    %1305 = vmatpush2.msra.mxu0 0.0
    %1306 = vmatprep.subr.mxu0 0.0
    %1307 = vmatpush2.msra.mxu0 0.0
    %1308 = vmatprep.mubr.f32.mxu0 0.0
    %1309 = vmatmul.mubr.f32.gmra.mxu0 %v1189
    %v1310 = vpop.f32.mrf.mxu0
    %v1311 = vadd.f32 0.0, %v1310
    %v1312 = vpop.f32.mrf.mxu0
    %v1313 = vadd.f32 0.0, %v1312
    %1314 = vdwg.mxu0
    %1315 = vmatprep.subr.mxu0 0.0
    %1316 = vmatpush1.msra.mxu0 %v1243
    %1317 = vmatprep.subr.mxu0 0.0
    %1318 = vmatpush1.msra.mxu0 %v1240
    %1319 = vmatprep.subr.mxu0 0.0
    %1320 = vmatpush1.msra.mxu0 %v1237
    %1321 = vmatprep.subr.mxu0 0.0
    %1322 = vmatpush1.msra.mxu0 %v1234
    %1323 = vmatprep.subr.mxu0 0.0
    %1324 = vmatpush1.msra.mxu0 %v1231
    %1325 = vmatprep.subr.mxu0 0.0
    %1326 = vmatpush1.msra.mxu0 %v1228
    %1327 = vmatprep.subr.mxu0 0.0
    %1328 = vmatpush1.msra.mxu0 %v1225
    %1329 = vmatprep.subr.mxu0 0.0
    %1330 = vmatpush1.msra.mxu0 %v1222
    %1331 = vmatprep.subr.mxu0 0.0
    %1332 = vmatpush1.msra.mxu0 %v1219
    %1333 = vmatprep.subr.mxu0 0.0
    %1334 = vmatpush1.msra.mxu0 %v1216
    %1335 = vmatprep.subr.mxu0 0.0
    %1336 = vmatpush1.msra.mxu0 %v1213
    %1337 = vmatprep.subr.mxu0 0.0
    %1338 = vmatpush1.msra.mxu0 %v1210
    %1339 = vmatprep.subr.mxu0 0.0
    %1340 = vmatpush1.msra.mxu0 %v1207
    %1341 = vmatprep.subr.mxu0 0.0
    %1342 = vmatpush1.msra.mxu0 %v1204
    %1343 = vmatprep.subr.mxu0 0.0
    %1344 = vmatpush1.msra.mxu0 %v1201
    %1345 = vmatprep.subr.mxu0 0.0
    %1346 = vmatpush1.msra.mxu0 %v1198
    %1347 = vmatprep.subr.mxu0 0.0
    %1348 = vmatpush2.msra.mxu0 0.0
    %1349 = vmatprep.subr.mxu0 0.0
    %1350 = vmatpush2.msra.mxu0 0.0
    %1351 = vmatprep.subr.mxu0 0.0
    %1352 = vmatpush2.msra.mxu0 0.0
    %1353 = vmatprep.subr.mxu0 0.0
    %1354 = vmatpush2.msra.mxu0 0.0
    %1355 = vmatprep.subr.mxu0 0.0
    %1356 = vmatpush2.msra.mxu0 0.0
    %1357 = vmatprep.subr.mxu0 0.0
    %1358 = vmatpush2.msra.mxu0 0.0
    %1359 = vmatprep.subr.mxu0 0.0
    %1360 = vmatpush2.msra.mxu0 0.0
    %1361 = vmatprep.subr.mxu0 0.0
    %1362 = vmatpush2.msra.mxu0 0.0
    %1363 = vmatprep.subr.mxu0 0.0
    %1364 = vmatpush2.msra.mxu0 0.0
    %1365 = vmatprep.subr.mxu0 0.0
    %1366 = vmatpush2.msra.mxu0 0.0
    %1367 = vmatprep.subr.mxu0 0.0
    %1368 = vmatpush2.msra.mxu0 0.0
    %1369 = vmatprep.subr.mxu0 0.0
    %1370 = vmatpush2.msra.mxu0 0.0
    %1371 = vmatprep.subr.mxu0 0.0
    %1372 = vmatpush2.msra.mxu0 0.0
    %1373 = vmatprep.subr.mxu0 0.0
    %1374 = vmatpush2.msra.mxu0 0.0
    %1375 = vmatprep.subr.mxu0 0.0
    %1376 = vmatpush2.msra.mxu0 0.0
    %1377 = vmatprep.subr.mxu0 0.0
    %1378 = vmatpush2.msra.mxu0 0.0
    %1379 = vmatprep.mubr.f32.mxu0 0.0
    %1380 = vmatmul.mubr.f32.gmra.mxu0 %v1189
    %v1381 = vpop.f32.mrf.mxu0
    %v1382 = vadd.f32 0.0, %v1381
    %v1383 = vpop.f32.mrf.mxu0
    %1384 = vdwg.mxu0
    %v1385 = vadd.f32 %v1195, %v1311
    %v1386 = vxor.u32 %v1385, 2147483648
    %v1387 = vmul.f32 %v1386, 1.442695
    %v1388 = vpow.pop %v1387
    %v1389 = vadd.f32 %v1388, 1.0
    %v1390 = vrcp.pop %v1389
    %v1391 = vmul.f32 1.0, %v1390
    %v1393 = vrot.slane %v1195, 1
    %v1395 = vadd.f32 %v1393, %v1313
    %v1396 = vxor.u32 %v1395, 2147483648
    %v1397 = vmul.f32 %v1396, 1.442695
    %v1398 = vpow.pop %v1397
    %v1399 = vadd.f32 %v1398, 1.0
    %v1400 = vrcp.pop %v1399
    %v1401 = vmul.f32 1.0, %v1400
    %v1402 = vld [vmem:[%s3] sm:$0x1]
    %v1403 = vadd.f32 %v1382, %v1402
    %v1404 = vmul.f32 %v1391, %v1403
    %v1405 = vrot.slane %v1195, 2
    %v1407 = vadd.f32 %v1405, %v1404
    %v1408 = vtanh.pop %v1407
    %v1409 = vsub.f32 %v1189, %v1408
    %v1410 = vmul.f32 %v1401, %v1409
    %v1411 = vadd.f32 %v1408, %v1410
    %1412 = vst [vmem:[#allocation2 + $0x5] sm:$0x1] %v1411
    %s1413 = sadd.s32 %s81, 6
    %s1414 = sld [smem:[#allocation4 + %s1413]]
    %s1415 = smul.u32 %s1414, 3
    %s1416 = scalar_lea.vmem [#allocation5], %s1415
    %v1417 = vld [vmem:[%s1416] sm:$0x7]
    %v1418 = vld [vmem:[#allocation8] sm:$0xff]
    %v1419 = vld [vmem:[#allocation8 + $0x8] sm:$0xff]
    %v1420 = vld [vmem:[#allocation8 + $0x10] sm:$0xff]
    %v1421 = vld [vmem:[#allocation8 + $0x18] sm:$0xff]
    %v1422 = vld [vmem:[#allocation8 + $0x20] sm:$0xff]
    %v1423 = vld [vmem:[#allocation8 + $0x28] sm:$0xff]
    %v1424 = vld [vmem:[#allocation8 + $0x30] sm:$0xff]
    %v1425 = vld [vmem:[#allocation8 + $0x38] sm:$0xff]
    %v1426 = vld [vmem:[#allocation8 + $0x40] sm:$0xff]
    %v1427 = vld [vmem:[#allocation8 + $0x48] sm:$0xff]
    %v1428 = vld [vmem:[#allocation8 + $0x50] sm:$0xff]
    %v1429 = vld [vmem:[#allocation8 + $0x58] sm:$0xff]
    %v1430 = vld [vmem:[#allocation8 + $0x60] sm:$0xff]
    %v1431 = vld [vmem:[#allocation8 + $0x68] sm:$0xff]
    %v1432 = vld [vmem:[#allocation8 + $0x70] sm:$0xff]
    %v1433 = vld [vmem:[#allocation8 + $0x78] sm:$0xff]
    %v1434 = vld [vmem:[#allocation8 + $0x80] sm:$0xff]
    %v1435 = vld [vmem:[#allocation8 + $0x88] sm:$0xff]
    %v1436 = vld [vmem:[#allocation8 + $0x90] sm:$0xff]
    %v1437 = vld [vmem:[#allocation8 + $0x98] sm:$0xff]
    %v1438 = vld [vmem:[#allocation8 + $0xa0] sm:$0xff]
    %v1439 = vld [vmem:[#allocation8 + $0xa8] sm:$0xff]
    %v1440 = vld [vmem:[#allocation8 + $0xb0] sm:$0xff]
    %v1441 = vld [vmem:[#allocation8 + $0xb8] sm:$0xff]
    %v1442 = vld [vmem:[#allocation8 + $0xc0] sm:$0xff]
    %v1443 = vld [vmem:[#allocation8 + $0xc8] sm:$0xff]
    %v1444 = vld [vmem:[#allocation8 + $0xd0] sm:$0xff]
    %v1445 = vld [vmem:[#allocation8 + $0xd8] sm:$0xff]
    %v1446 = vld [vmem:[#allocation8 + $0xe0] sm:$0xff]
    %v1447 = vld [vmem:[#allocation8 + $0xe8] sm:$0xff]
    %v1448 = vld [vmem:[#allocation8 + $0xf0] sm:$0xff]
    %v1449 = vld [vmem:[#allocation8 + $0xf8] sm:$0xff]
    %v1450 = vld [vmem:[#allocation8 + $0x100] sm:$0xff]
    %v1451 = vld [vmem:[#allocation8 + $0x108] sm:$0xff]
    %v1452 = vld [vmem:[#allocation8 + $0x110] sm:$0xff]
    %v1453 = vld [vmem:[#allocation8 + $0x118] sm:$0xff]
    %v1454 = vld [vmem:[#allocation8 + $0x120] sm:$0xff]
    %v1455 = vld [vmem:[#allocation8 + $0x128] sm:$0xff]
    %v1456 = vld [vmem:[#allocation8 + $0x130] sm:$0xff]
    %v1457 = vld [vmem:[#allocation8 + $0x138] sm:$0xff]
    %v1458 = vld [vmem:[#allocation8 + $0x140] sm:$0xff]
    %v1459 = vld [vmem:[#allocation8 + $0x148] sm:$0xff]
    %v1460 = vld [vmem:[#allocation8 + $0x150] sm:$0xff]
    %v1461 = vld [vmem:[#allocation8 + $0x158] sm:$0xff]
    %v1462 = vld [vmem:[#allocation8 + $0x160] sm:$0xff]
    %v1463 = vld [vmem:[#allocation8 + $0x168] sm:$0xff]
    %v1464 = vld [vmem:[#allocation8 + $0x170] sm:$0xff]
    %v1465 = vld [vmem:[#allocation8 + $0x178] sm:$0xff]
    %1466 = vmatprep.subr.mxu0 %v1464
    %1467 = vmatpush1.msra.mxu0 %v1463
    %1468 = vmatprep.subr.mxu0 %v1461
    %1469 = vmatpush1.msra.mxu0 %v1460
    %1470 = vmatprep.subr.mxu0 %v1458
    %1471 = vmatpush1.msra.mxu0 %v1457
    %1472 = vmatprep.subr.mxu0 %v1455
    %1473 = vmatpush1.msra.mxu0 %v1454
    %1474 = vmatprep.subr.mxu0 %v1452
    %1475 = vmatpush1.msra.mxu0 %v1451
    %1476 = vmatprep.subr.mxu0 %v1449
    %1477 = vmatpush1.msra.mxu0 %v1448
    %1478 = vmatprep.subr.mxu0 %v1446
    %1479 = vmatpush1.msra.mxu0 %v1445
    %1480 = vmatprep.subr.mxu0 %v1443
    %1481 = vmatpush1.msra.mxu0 %v1442
    %1482 = vmatprep.subr.mxu0 %v1440
    %1483 = vmatpush1.msra.mxu0 %v1439
    %1484 = vmatprep.subr.mxu0 %v1437
    %1485 = vmatpush1.msra.mxu0 %v1436
    %1486 = vmatprep.subr.mxu0 %v1434
    %1487 = vmatpush1.msra.mxu0 %v1433
    %1488 = vmatprep.subr.mxu0 %v1431
    %1489 = vmatpush1.msra.mxu0 %v1430
    %1490 = vmatprep.subr.mxu0 %v1428
    %1491 = vmatpush1.msra.mxu0 %v1427
    %1492 = vmatprep.subr.mxu0 %v1425
    %1493 = vmatpush1.msra.mxu0 %v1424
    %1494 = vmatprep.subr.mxu0 %v1422
    %1495 = vmatpush1.msra.mxu0 %v1421
    %1496 = vmatprep.subr.mxu0 %v1419
    %1497 = vmatpush1.msra.mxu0 %v1418
    %1498 = vmatprep.subr.mxu0 0.0
    %1499 = vmatpush2.msra.mxu0 0.0
    %1500 = vmatprep.subr.mxu0 0.0
    %1501 = vmatpush2.msra.mxu0 0.0
    %1502 = vmatprep.subr.mxu0 0.0
    %1503 = vmatpush2.msra.mxu0 0.0
    %1504 = vmatprep.subr.mxu0 0.0
    %1505 = vmatpush2.msra.mxu0 0.0
    %1506 = vmatprep.subr.mxu0 0.0
    %1507 = vmatpush2.msra.mxu0 0.0
    %1508 = vmatprep.subr.mxu0 0.0
    %1509 = vmatpush2.msra.mxu0 0.0
    %1510 = vmatprep.subr.mxu0 0.0
    %1511 = vmatpush2.msra.mxu0 0.0
    %1512 = vmatprep.subr.mxu0 0.0
    %1513 = vmatpush2.msra.mxu0 0.0
    %1514 = vmatprep.subr.mxu0 0.0
    %1515 = vmatpush2.msra.mxu0 0.0
    %1516 = vmatprep.subr.mxu0 0.0
    %1517 = vmatpush2.msra.mxu0 0.0
    %1518 = vmatprep.subr.mxu0 0.0
    %1519 = vmatpush2.msra.mxu0 0.0
    %1520 = vmatprep.subr.mxu0 0.0
    %1521 = vmatpush2.msra.mxu0 0.0
    %1522 = vmatprep.subr.mxu0 0.0
    %1523 = vmatpush2.msra.mxu0 0.0
    %1524 = vmatprep.subr.mxu0 0.0
    %1525 = vmatpush2.msra.mxu0 0.0
    %1526 = vmatprep.subr.mxu0 0.0
    %1527 = vmatpush2.msra.mxu0 0.0
    %1528 = vmatprep.subr.mxu0 0.0
    %1529 = vmatpush2.msra.mxu0 0.0
    %1530 = vmatprep.mubr.f32.mxu0 0.0
    %1531 = vmatmul.mubr.f32.gmra.mxu0 %v1411
    %v1532 = vpop.f32.mrf.mxu0
    %v1533 = vadd.f32 0.0, %v1532
    %v1534 = vpop.f32.mrf.mxu0
    %v1535 = vadd.f32 0.0, %v1534
    %1536 = vdwg.mxu0
    %1537 = vmatprep.subr.mxu0 0.0
    %1538 = vmatpush1.msra.mxu0 %v1465
    %1539 = vmatprep.subr.mxu0 0.0
    %1540 = vmatpush1.msra.mxu0 %v1462
    %1541 = vmatprep.subr.mxu0 0.0
    %1542 = vmatpush1.msra.mxu0 %v1459
    %1543 = vmatprep.subr.mxu0 0.0
    %1544 = vmatpush1.msra.mxu0 %v1456
    %1545 = vmatprep.subr.mxu0 0.0
    %1546 = vmatpush1.msra.mxu0 %v1453
    %1547 = vmatprep.subr.mxu0 0.0
    %1548 = vmatpush1.msra.mxu0 %v1450
    %1549 = vmatprep.subr.mxu0 0.0
    %1550 = vmatpush1.msra.mxu0 %v1447
    %1551 = vmatprep.subr.mxu0 0.0
    %1552 = vmatpush1.msra.mxu0 %v1444
    %1553 = vmatprep.subr.mxu0 0.0
    %1554 = vmatpush1.msra.mxu0 %v1441
    %1555 = vmatprep.subr.mxu0 0.0
    %1556 = vmatpush1.msra.mxu0 %v1438
    %1557 = vmatprep.subr.mxu0 0.0
    %1558 = vmatpush1.msra.mxu0 %v1435
    %1559 = vmatprep.subr.mxu0 0.0
    %1560 = vmatpush1.msra.mxu0 %v1432
    %1561 = vmatprep.subr.mxu0 0.0
    %1562 = vmatpush1.msra.mxu0 %v1429
    %1563 = vmatprep.subr.mxu0 0.0
    %1564 = vmatpush1.msra.mxu0 %v1426
    %1565 = vmatprep.subr.mxu0 0.0
    %1566 = vmatpush1.msra.mxu0 %v1423
    %1567 = vmatprep.subr.mxu0 0.0
    %1568 = vmatpush1.msra.mxu0 %v1420
    %1569 = vmatprep.subr.mxu0 0.0
    %1570 = vmatpush2.msra.mxu0 0.0
    %1571 = vmatprep.subr.mxu0 0.0
    %1572 = vmatpush2.msra.mxu0 0.0
    %1573 = vmatprep.subr.mxu0 0.0
    %1574 = vmatpush2.msra.mxu0 0.0
    %1575 = vmatprep.subr.mxu0 0.0
    %1576 = vmatpush2.msra.mxu0 0.0
    %1577 = vmatprep.subr.mxu0 0.0
    %1578 = vmatpush2.msra.mxu0 0.0
    %1579 = vmatprep.subr.mxu0 0.0
    %1580 = vmatpush2.msra.mxu0 0.0
    %1581 = vmatprep.subr.mxu0 0.0
    %1582 = vmatpush2.msra.mxu0 0.0
    %1583 = vmatprep.subr.mxu0 0.0
    %1584 = vmatpush2.msra.mxu0 0.0
    %1585 = vmatprep.subr.mxu0 0.0
    %1586 = vmatpush2.msra.mxu0 0.0
    %1587 = vmatprep.subr.mxu0 0.0
    %1588 = vmatpush2.msra.mxu0 0.0
    %1589 = vmatprep.subr.mxu0 0.0
    %1590 = vmatpush2.msra.mxu0 0.0
    %1591 = vmatprep.subr.mxu0 0.0
    %1592 = vmatpush2.msra.mxu0 0.0
    %1593 = vmatprep.subr.mxu0 0.0
    %1594 = vmatpush2.msra.mxu0 0.0
    %1595 = vmatprep.subr.mxu0 0.0
    %1596 = vmatpush2.msra.mxu0 0.0
    %1597 = vmatprep.subr.mxu0 0.0
    %1598 = vmatpush2.msra.mxu0 0.0
    %1599 = vmatprep.subr.mxu0 0.0
    %1600 = vmatpush2.msra.mxu0 0.0
    %1601 = vmatprep.mubr.f32.mxu0 0.0
    %1602 = vmatmul.mubr.f32.gmra.mxu0 %v1411
    %v1603 = vpop.f32.mrf.mxu0
    %v1604 = vadd.f32 0.0, %v1603
    %v1605 = vpop.f32.mrf.mxu0
    %1606 = vdwg.mxu0
    %v1607 = vadd.f32 %v1417, %v1533
    %v1608 = vxor.u32 %v1607, 2147483648
    %v1609 = vmul.f32 %v1608, 1.442695
    %v1610 = vpow.pop %v1609
    %v1611 = vadd.f32 %v1610, 1.0
    %v1612 = vrcp.pop %v1611
    %v1613 = vmul.f32 1.0, %v1612
    %v1615 = vrot.slane %v1417, 1
    %v1617 = vadd.f32 %v1615, %v1535
    %v1618 = vxor.u32 %v1617, 2147483648
    %v1619 = vmul.f32 %v1618, 1.442695
    %v1620 = vpow.pop %v1619
    %v1621 = vadd.f32 %v1620, 1.0
    %v1622 = vrcp.pop %v1621
    %v1623 = vmul.f32 1.0, %v1622
    %v1624 = vld [vmem:[%s3] sm:$0x1]
    %v1625 = vadd.f32 %v1604, %v1624
    %v1626 = vmul.f32 %v1613, %v1625
    %v1627 = vrot.slane %v1417, 2
    %v1629 = vadd.f32 %v1627, %v1626
    %v1630 = vtanh.pop %v1629
    %v1631 = vsub.f32 %v1411, %v1630
    %v1632 = vmul.f32 %v1623, %v1631
    %v1633 = vadd.f32 %v1630, %v1632
    %1634 = vst [vmem:[#allocation2 + $0x6] sm:$0x1] %v1633
    %s1635 = sadd.s32 %s81, 7
    %s1636 = sld [smem:[#allocation4 + %s1635]]
    %s1637 = smul.u32 %s1636, 3
    %s1638 = scalar_lea.vmem [#allocation5], %s1637
    %v1639 = vld [vmem:[%s1638] sm:$0x7]
    %v1640 = vld [vmem:[#allocation8] sm:$0xff]
    %v1641 = vld [vmem:[#allocation8 + $0x8] sm:$0xff]
    %v1642 = vld [vmem:[#allocation8 + $0x10] sm:$0xff]
    %v1643 = vld [vmem:[#allocation8 + $0x18] sm:$0xff]
    %v1644 = vld [vmem:[#allocation8 + $0x20] sm:$0xff]
    %v1645 = vld [vmem:[#allocation8 + $0x28] sm:$0xff]
    %v1646 = vld [vmem:[#allocation8 + $0x30] sm:$0xff]
    %v1647 = vld [vmem:[#allocation8 + $0x38] sm:$0xff]
    %v1648 = vld [vmem:[#allocation8 + $0x40] sm:$0xff]
    %v1649 = vld [vmem:[#allocation8 + $0x48] sm:$0xff]
    %v1650 = vld [vmem:[#allocation8 + $0x50] sm:$0xff]
    %v1651 = vld [vmem:[#allocation8 + $0x58] sm:$0xff]
    %v1652 = vld [vmem:[#allocation8 + $0x60] sm:$0xff]
    %v1653 = vld [vmem:[#allocation8 + $0x68] sm:$0xff]
    %v1654 = vld [vmem:[#allocation8 + $0x70] sm:$0xff]
    %v1655 = vld [vmem:[#allocation8 + $0x78] sm:$0xff]
    %v1656 = vld [vmem:[#allocation8 + $0x80] sm:$0xff]
    %v1657 = vld [vmem:[#allocation8 + $0x88] sm:$0xff]
    %v1658 = vld [vmem:[#allocation8 + $0x90] sm:$0xff]
    %v1659 = vld [vmem:[#allocation8 + $0x98] sm:$0xff]
    %v1660 = vld [vmem:[#allocation8 + $0xa0] sm:$0xff]
    %v1661 = vld [vmem:[#allocation8 + $0xa8] sm:$0xff]
    %v1662 = vld [vmem:[#allocation8 + $0xb0] sm:$0xff]
    %v1663 = vld [vmem:[#allocation8 + $0xb8] sm:$0xff]
    %v1664 = vld [vmem:[#allocation8 + $0xc0] sm:$0xff]
    %v1665 = vld [vmem:[#allocation8 + $0xc8] sm:$0xff]
    %v1666 = vld [vmem:[#allocation8 + $0xd0] sm:$0xff]
    %v1667 = vld [vmem:[#allocation8 + $0xd8] sm:$0xff]
    %v1668 = vld [vmem:[#allocation8 + $0xe0] sm:$0xff]
    %v1669 = vld [vmem:[#allocation8 + $0xe8] sm:$0xff]
    %v1670 = vld [vmem:[#allocation8 + $0xf0] sm:$0xff]
    %v1671 = vld [vmem:[#allocation8 + $0xf8] sm:$0xff]
    %v1672 = vld [vmem:[#allocation8 + $0x100] sm:$0xff]
    %v1673 = vld [vmem:[#allocation8 + $0x108] sm:$0xff]
    %v1674 = vld [vmem:[#allocation8 + $0x110] sm:$0xff]
    %v1675 = vld [vmem:[#allocation8 + $0x118] sm:$0xff]
    %v1676 = vld [vmem:[#allocation8 + $0x120] sm:$0xff]
    %v1677 = vld [vmem:[#allocation8 + $0x128] sm:$0xff]
    %v1678 = vld [vmem:[#allocation8 + $0x130] sm:$0xff]
    %v1679 = vld [vmem:[#allocation8 + $0x138] sm:$0xff]
    %v1680 = vld [vmem:[#allocation8 + $0x140] sm:$0xff]
    %v1681 = vld [vmem:[#allocation8 + $0x148] sm:$0xff]
    %v1682 = vld [vmem:[#allocation8 + $0x150] sm:$0xff]
    %v1683 = vld [vmem:[#allocation8 + $0x158] sm:$0xff]
    %v1684 = vld [vmem:[#allocation8 + $0x160] sm:$0xff]
    %v1685 = vld [vmem:[#allocation8 + $0x168] sm:$0xff]
    %v1686 = vld [vmem:[#allocation8 + $0x170] sm:$0xff]
    %v1687 = vld [vmem:[#allocation8 + $0x178] sm:$0xff]
    %1688 = vmatprep.subr.mxu0 %v1686
    %1689 = vmatpush1.msra.mxu0 %v1685
    %1690 = vmatprep.subr.mxu0 %v1683
    %1691 = vmatpush1.msra.mxu0 %v1682
    %1692 = vmatprep.subr.mxu0 %v1680
    %1693 = vmatpush1.msra.mxu0 %v1679
    %1694 = vmatprep.subr.mxu0 %v1677
    %1695 = vmatpush1.msra.mxu0 %v1676
    %1696 = vmatprep.subr.mxu0 %v1674
    %1697 = vmatpush1.msra.mxu0 %v1673
    %1698 = vmatprep.subr.mxu0 %v1671
    %1699 = vmatpush1.msra.mxu0 %v1670
    %1700 = vmatprep.subr.mxu0 %v1668
    %1701 = vmatpush1.msra.mxu0 %v1667
    %1702 = vmatprep.subr.mxu0 %v1665
    %1703 = vmatpush1.msra.mxu0 %v1664
    %1704 = vmatprep.subr.mxu0 %v1662
    %1705 = vmatpush1.msra.mxu0 %v1661
    %1706 = vmatprep.subr.mxu0 %v1659
    %1707 = vmatpush1.msra.mxu0 %v1658
    %1708 = vmatprep.subr.mxu0 %v1656
    %1709 = vmatpush1.msra.mxu0 %v1655
    %1710 = vmatprep.subr.mxu0 %v1653
    %1711 = vmatpush1.msra.mxu0 %v1652
    %1712 = vmatprep.subr.mxu0 %v1650
    %1713 = vmatpush1.msra.mxu0 %v1649
    %1714 = vmatprep.subr.mxu0 %v1647
    %1715 = vmatpush1.msra.mxu0 %v1646
    %1716 = vmatprep.subr.mxu0 %v1644
    %1717 = vmatpush1.msra.mxu0 %v1643
    %1718 = vmatprep.subr.mxu0 %v1641
    %1719 = vmatpush1.msra.mxu0 %v1640
    %1720 = vmatprep.subr.mxu0 0.0
    %1721 = vmatpush2.msra.mxu0 0.0
    %1722 = vmatprep.subr.mxu0 0.0
    %1723 = vmatpush2.msra.mxu0 0.0
    %1724 = vmatprep.subr.mxu0 0.0
    %1725 = vmatpush2.msra.mxu0 0.0
    %1726 = vmatprep.subr.mxu0 0.0
    %1727 = vmatpush2.msra.mxu0 0.0
    %1728 = vmatprep.subr.mxu0 0.0
    %1729 = vmatpush2.msra.mxu0 0.0
    %1730 = vmatprep.subr.mxu0 0.0
    %1731 = vmatpush2.msra.mxu0 0.0
    %1732 = vmatprep.subr.mxu0 0.0
    %1733 = vmatpush2.msra.mxu0 0.0
    %1734 = vmatprep.subr.mxu0 0.0
    %1735 = vmatpush2.msra.mxu0 0.0
    %1736 = vmatprep.subr.mxu0 0.0
    %1737 = vmatpush2.msra.mxu0 0.0
    %1738 = vmatprep.subr.mxu0 0.0
    %1739 = vmatpush2.msra.mxu0 0.0
    %1740 = vmatprep.subr.mxu0 0.0
    %1741 = vmatpush2.msra.mxu0 0.0
    %1742 = vmatprep.subr.mxu0 0.0
    %1743 = vmatpush2.msra.mxu0 0.0
    %1744 = vmatprep.subr.mxu0 0.0
    %1745 = vmatpush2.msra.mxu0 0.0
    %1746 = vmatprep.subr.mxu0 0.0
    %1747 = vmatpush2.msra.mxu0 0.0
    %1748 = vmatprep.subr.mxu0 0.0
    %1749 = vmatpush2.msra.mxu0 0.0
    %1750 = vmatprep.subr.mxu0 0.0
    %1751 = vmatpush2.msra.mxu0 0.0
    %1752 = vmatprep.mubr.f32.mxu0 0.0
    %1753 = vmatmul.mubr.f32.gmra.mxu0 %v1633
    %v1754 = vpop.f32.mrf.mxu0
    %v1755 = vadd.f32 0.0, %v1754
    %v1756 = vpop.f32.mrf.mxu0
    %v1757 = vadd.f32 0.0, %v1756
    %1758 = vdwg.mxu0
    %1759 = vmatprep.subr.mxu0 0.0
    %1760 = vmatpush1.msra.mxu0 %v1687
    %1761 = vmatprep.subr.mxu0 0.0
    %1762 = vmatpush1.msra.mxu0 %v1684
    %1763 = vmatprep.subr.mxu0 0.0
    %1764 = vmatpush1.msra.mxu0 %v1681
    %1765 = vmatprep.subr.mxu0 0.0
    %1766 = vmatpush1.msra.mxu0 %v1678
    %1767 = vmatprep.subr.mxu0 0.0
    %1768 = vmatpush1.msra.mxu0 %v1675
    %1769 = vmatprep.subr.mxu0 0.0
    %1770 = vmatpush1.msra.mxu0 %v1672
    %1771 = vmatprep.subr.mxu0 0.0
    %1772 = vmatpush1.msra.mxu0 %v1669
    %1773 = vmatprep.subr.mxu0 0.0
    %1774 = vmatpush1.msra.mxu0 %v1666
    %1775 = vmatprep.subr.mxu0 0.0
    %1776 = vmatpush1.msra.mxu0 %v1663
    %1777 = vmatprep.subr.mxu0 0.0
    %1778 = vmatpush1.msra.mxu0 %v1660
    %1779 = vmatprep.subr.mxu0 0.0
    %1780 = vmatpush1.msra.mxu0 %v1657
    %1781 = vmatprep.subr.mxu0 0.0
    %1782 = vmatpush1.msra.mxu0 %v1654
    %1783 = vmatprep.subr.mxu0 0.0
    %1784 = vmatpush1.msra.mxu0 %v1651
    %1785 = vmatprep.subr.mxu0 0.0
    %1786 = vmatpush1.msra.mxu0 %v1648
    %1787 = vmatprep.subr.mxu0 0.0
    %1788 = vmatpush1.msra.mxu0 %v1645
    %1789 = vmatprep.subr.mxu0 0.0
    %1790 = vmatpush1.msra.mxu0 %v1642
    %1791 = vmatprep.subr.mxu0 0.0
    %1792 = vmatpush2.msra.mxu0 0.0
    %1793 = vmatprep.subr.mxu0 0.0
    %1794 = vmatpush2.msra.mxu0 0.0
    %1795 = vmatprep.subr.mxu0 0.0
    %1796 = vmatpush2.msra.mxu0 0.0
    %1797 = vmatprep.subr.mxu0 0.0
    %1798 = vmatpush2.msra.mxu0 0.0
    %1799 = vmatprep.subr.mxu0 0.0
    %1800 = vmatpush2.msra.mxu0 0.0
    %1801 = vmatprep.subr.mxu0 0.0
    %1802 = vmatpush2.msra.mxu0 0.0
    %1803 = vmatprep.subr.mxu0 0.0
    %1804 = vmatpush2.msra.mxu0 0.0
    %1805 = vmatprep.subr.mxu0 0.0
    %1806 = vmatpush2.msra.mxu0 0.0
    %1807 = vmatprep.subr.mxu0 0.0
    %1808 = vmatpush2.msra.mxu0 0.0
    %1809 = vmatprep.subr.mxu0 0.0
    %1810 = vmatpush2.msra.mxu0 0.0
    %1811 = vmatprep.subr.mxu0 0.0
    %1812 = vmatpush2.msra.mxu0 0.0
    %1813 = vmatprep.subr.mxu0 0.0
    %1814 = vmatpush2.msra.mxu0 0.0
    %1815 = vmatprep.subr.mxu0 0.0
    %1816 = vmatpush2.msra.mxu0 0.0
    %1817 = vmatprep.subr.mxu0 0.0
    %1818 = vmatpush2.msra.mxu0 0.0
    %1819 = vmatprep.subr.mxu0 0.0
    %1820 = vmatpush2.msra.mxu0 0.0
    %1821 = vmatprep.subr.mxu0 0.0
    %1822 = vmatpush2.msra.mxu0 0.0
    %1823 = vmatprep.mubr.f32.mxu0 0.0
    %1824 = vmatmul.mubr.f32.gmra.mxu0 %v1633
    %v1825 = vpop.f32.mrf.mxu0
    %v1826 = vadd.f32 0.0, %v1825
    %v1827 = vpop.f32.mrf.mxu0
    %1828 = vdwg.mxu0
    %v1829 = vadd.f32 %v1639, %v1755
    %v1830 = vxor.u32 %v1829, 2147483648
    %v1831 = vmul.f32 %v1830, 1.442695
    %v1832 = vpow.pop %v1831
    %v1833 = vadd.f32 %v1832, 1.0
    %v1834 = vrcp.pop %v1833
    %v1835 = vmul.f32 1.0, %v1834
    %v1837 = vrot.slane %v1639, 1
    %v1839 = vadd.f32 %v1837, %v1757
    %v1840 = vxor.u32 %v1839, 2147483648
    %v1841 = vmul.f32 %v1840, 1.442695
    %v1842 = vpow.pop %v1841
    %v1843 = vadd.f32 %v1842, 1.0
    %v1844 = vrcp.pop %v1843
    %v1845 = vmul.f32 1.0, %v1844
    %v1846 = vld [vmem:[%s3] sm:$0x1]
    %v1847 = vadd.f32 %v1826, %v1846
    %v1848 = vmul.f32 %v1835, %v1847
    %v1849 = vrot.slane %v1639, 2
    %v1851 = vadd.f32 %v1849, %v1848
    %v1852 = vtanh.pop %v1851
    %v1853 = vsub.f32 %v1633, %v1852
    %v1854 = vmul.f32 %v1845, %v1853
    %v1855 = vadd.f32 %v1852, %v1854
    %1856 = vst [vmem:[#allocation2 + $0x7] sm:$0x1] %v1855
    %1857 = vst [vmem:[%s8] sm:$0x1] %v1855
    %v1858 = vld [vmem:[#allocation2] sm:$0xff]
    %v1859 = vld [vmem:[#allocation10] sm:$0xff]
    %v1860 = vld [vmem:[#allocation10 + $0x8] sm:$0xff]
    %v1861 = vld [vmem:[#allocation10 + $0x10] sm:$0xff]
    %v1862 = vld [vmem:[#allocation10 + $0x18] sm:$0xff]
    %v1863 = vld [vmem:[#allocation10 + $0x20] sm:$0xff]
    %v1864 = vld [vmem:[#allocation10 + $0x28] sm:$0xff]
    %v1865 = vld [vmem:[#allocation10 + $0x30] sm:$0xff]
    %v1866 = vld [vmem:[#allocation10 + $0x38] sm:$0xff]
    %v1867 = vld [vmem:[#allocation10 + $0x40] sm:$0xff]
    %v1868 = vld [vmem:[#allocation10 + $0x48] sm:$0xff]
    %v1869 = vld [vmem:[#allocation10 + $0x50] sm:$0xff]
    %v1870 = vld [vmem:[#allocation10 + $0x58] sm:$0xff]
    %v1871 = vld [vmem:[#allocation10 + $0x60] sm:$0xff]
    %v1872 = vld [vmem:[#allocation10 + $0x68] sm:$0xff]
    %v1873 = vld [vmem:[#allocation10 + $0x70] sm:$0xff]
    %v1874 = vld [vmem:[#allocation10 + $0x78] sm:$0xff]
    %v1875 = vld [vmem:[%s5] sm:$0x1]
    %v1877 = vlaneseq
    %v1878 = vshrl.u32 %v1877, 7
    %v1879 = vsub.s32 0, %v1878
    %v1880 = vrot.slane %v1875, %v1879
    %1882 = vmatprep.subr.mxu0 0.0
    %1883 = vmatpush1.msra.mxu0 %v1874
    %1884 = vmatprep.subr.mxu0 0.0
    %1885 = vmatpush1.msra.mxu0 %v1873
    %1886 = vmatprep.subr.mxu0 0.0
    %1887 = vmatpush1.msra.mxu0 %v1872
    %1888 = vmatprep.subr.mxu0 0.0
    %1889 = vmatpush1.msra.mxu0 %v1871
    %1890 = vmatprep.subr.mxu0 0.0
    %1891 = vmatpush1.msra.mxu0 %v1870
    %1892 = vmatprep.subr.mxu0 0.0
    %1893 = vmatpush1.msra.mxu0 %v1869
    %1894 = vmatprep.subr.mxu0 0.0
    %1895 = vmatpush1.msra.mxu0 %v1868
    %1896 = vmatprep.subr.mxu0 0.0
    %1897 = vmatpush1.msra.mxu0 %v1867
    %1898 = vmatprep.subr.mxu0 0.0
    %1899 = vmatpush1.msra.mxu0 %v1866
    %1900 = vmatprep.subr.mxu0 0.0
    %1901 = vmatpush1.msra.mxu0 %v1865
    %1902 = vmatprep.subr.mxu0 0.0
    %1903 = vmatpush1.msra.mxu0 %v1864
    %1904 = vmatprep.subr.mxu0 0.0
    %1905 = vmatpush1.msra.mxu0 %v1863
    %1906 = vmatprep.subr.mxu0 0.0
    %1907 = vmatpush1.msra.mxu0 %v1862
    %1908 = vmatprep.subr.mxu0 0.0
    %1909 = vmatpush1.msra.mxu0 %v1861
    %1910 = vmatprep.subr.mxu0 0.0
    %1911 = vmatpush1.msra.mxu0 %v1860
    %1912 = vmatprep.subr.mxu0 0.0
    %1913 = vmatpush1.msra.mxu0 %v1859
    %1914 = vmatprep.subr.mxu0 0.0
    %1915 = vmatpush2.msra.mxu0 0.0
    %1916 = vmatprep.subr.mxu0 0.0
    %1917 = vmatpush2.msra.mxu0 0.0
    %1918 = vmatprep.subr.mxu0 0.0
    %1919 = vmatpush2.msra.mxu0 0.0
    %1920 = vmatprep.subr.mxu0 0.0
    %1921 = vmatpush2.msra.mxu0 0.0
    %1922 = vmatprep.subr.mxu0 0.0
    %1923 = vmatpush2.msra.mxu0 0.0
    %1924 = vmatprep.subr.mxu0 0.0
    %1925 = vmatpush2.msra.mxu0 0.0
    %1926 = vmatprep.subr.mxu0 0.0
    %1927 = vmatpush2.msra.mxu0 0.0
    %1928 = vmatprep.subr.mxu0 0.0
    %1929 = vmatpush2.msra.mxu0 0.0
    %1930 = vmatprep.subr.mxu0 0.0
    %1931 = vmatpush2.msra.mxu0 0.0
    %1932 = vmatprep.subr.mxu0 0.0
    %1933 = vmatpush2.msra.mxu0 0.0
    %1934 = vmatprep.subr.mxu0 0.0
    %1935 = vmatpush2.msra.mxu0 0.0
    %1936 = vmatprep.subr.mxu0 0.0
    %1937 = vmatpush2.msra.mxu0 0.0
    %1938 = vmatprep.subr.mxu0 0.0
    %1939 = vmatpush2.msra.mxu0 0.0
    %1940 = vmatprep.subr.mxu0 0.0
    %1941 = vmatpush2.msra.mxu0 0.0
    %1942 = vmatprep.subr.mxu0 0.0
    %1943 = vmatpush2.msra.mxu0 0.0
    %1944 = vmatprep.subr.mxu0 0.0
    %1945 = vmatpush2.msra.mxu0 0.0
    %1946 = vmatprep.mubr.f32.mxu0 0.0
    %1947 = vmatmul.mubr.f32.gmra.mxu0 %v1858
    %v1948 = vpop.f32.mrf.mxu0
    %v1949 = vadd.f32 %v1880, %v1948
    %v1950 = vpop.f32.mrf.mxu0
    %1951 = vdwg.mxu0
    %1952 = vst [vmem:[#allocation11] sm:$0xff] %v1949
    // Predicated region
    $region42: #{rnn_forward_seq.1} parent=1 // pred_check
      _
    $region43: #{rnn_forward_seq.1} parent=1 // pred_check_branch
      %1954 = sbr.rel (0) target = $region45
    $region44: #{rnn_forward_seq.1} parent=1 // pred_region
      %s1956 = ssub.s32 128, 128
      %1957 = vsyncadd [#allocation7], %s1956
      %s1959 = sshll.u32 [#allocation11], 4
      %s1960 = int_to_ptr.vmem [resolvable:$true] %s1959
      %1962 = dma.vmem_to_hbm [thread:$0]  %s1960, 128, %s7, [#allocation7]
    $region45: #{rnn_forward_seq.1} parent=1 // pred_fallthru
      _
    // Predicated region
    $region46: #{rnn_forward_seq.1} parent=1 // pred_check
      _
    $region47: #{rnn_forward_seq.1} parent=1 // pred_check_branch
      %1964 = sbr.rel (0) target = $region49
    $region48: #{rnn_forward_seq.1} parent=1 // pred_region
      _
    $region49: #{rnn_forward_seq.1} parent=1 // pred_fallthru
      _
    // Predicated region
    $region50: #{rnn_forward_seq.1} parent=1 // pred_check
      _
    $region51: #{rnn_forward_seq.1} parent=1 // pred_check_branch
      %1966 = sbr.rel (0) target = $region53
    $region52: #{rnn_forward_seq.1} parent=1 // pred_region
      %1967 = dma.done [#allocation7], 128
    $region53: #{rnn_forward_seq.1} parent=1 // pred_fallthru
      _
    // Predicated region
    $region54: #{rnn_forward_seq.1} parent=1 // pred_check
      _
    $region55: #{rnn_forward_seq.1} parent=1 // pred_check_branch
      %1969 = sbr.rel (0) target = $region57
    $region56: #{rnn_forward_seq.1} parent=1 // pred_region
      _
    $region57: #{rnn_forward_seq.1} parent=1 // pred_fallthru
      _
    %1970 = vsyncpa [#allocation6], 1
    %1971 = vsyncpa [#allocation9], 1
    %1972 = vsyncpa [#allocation7], 1

</llo_original>
